<compile_context>
chip_gen: v7x
topology: tpu7x:2x2x1
jax: 0.10.0
libtpu: 0.0.40
codegen_flags: <defaults>
</compile_context>

<pallas_src>
import math
import functools

import jax
import jax.numpy as jnp
from jax import lax
from jax.experimental import pallas as pl
from jax.experimental.pallas import tpu as pltpu


# ---------------------------------------------------------------------------
# per-generation VMEM limit (v7x has 64 MiB physical; v5e/v6e have 128 MiB)
# ---------------------------------------------------------------------------

def _vmem_limit_bytes():
    cap = None
    try:
        info = pltpu.get_tpu_info()
        cap = getattr(info, "vmem_capacity_bytes", None)
    except Exception:
        cap = None
    if not cap:
        cap = 64 * 1024 * 1024          # conservative fallback (safe on v7x)
    return int(max(32 * 1024 * 1024, min(cap * 3 // 4, 96 * 1024 * 1024)))


_VMEM_LIMIT = _vmem_limit_bytes()


# ---------------------------------------------------------------------------
# small helpers
# ---------------------------------------------------------------------------

def _ln(x, g, b, eps=1e-5):
    mu = jnp.mean(x, axis=-1, keepdims=True)
    var = jnp.mean(jnp.square(x - mu), axis=-1, keepdims=True)
    return (x - mu) * lax.rsqrt(var + eps) * g + b


def _bf16(x):
    return x.astype(jnp.bfloat16)


def _round_up(x, n):
    return ((x + n - 1) // n) * n


def _pick_row_tile(m, row_bytes, budget=8 * 1024 * 1024, cap=512):
    """Row tile: multiple of 8, under a VMEM budget; callers pad m up to it."""
    t = min(cap, max(8, budget // max(row_bytes, 1)))
    t -= t % 8
    t = max(t, 8)
    return min(t, _round_up(m, 8))


def _pad_rows(x, m_pad):
    m = x.shape[0]
    if m_pad == m:
        return x
    return jnp.pad(x, ((0, m_pad - m), (0, 0)))


def _kv_tile(s, cap=512):
    """Largest KV tile <= cap that divides s (multiple of 128 when tiled)."""
    if s <= cap:
        return s
    t = cap - (cap % 128)
    while t >= 128 and s % t != 0:
        t -= 128
    return t if t >= 128 else s


def _ff_tile(f, cap=2048):
    """FFN hidden-dim tile <= cap dividing f (multiple of 128 when tiled)."""
    if f <= cap:
        return f
    t = cap - (cap % 128)
    while t >= 128 and f % t != 0:
        t -= 128
    return t if t >= 128 else f


# ---------------------------------------------------------------------------
# Pallas kernels
# ---------------------------------------------------------------------------

def _moe_attn_kernel(x_ref, wqkv_ref, bqkv_ref, wo_ref, bo_ref, gw_ref, gb_ref,
                     o_ref, acc_ref, gates_ref, *, nhead, kv_tile):
    """Fused gate + merged-head causal self-attention for one (batch, expert)."""
    e = pl.program_id(1)
    n_exp = pl.num_programs(1)

    x = x_ref[0]                                   # (S, D) f32
    seq, d_model = x.shape
    heads = nhead
    dh = d_model // heads
    scale = 1.0 / math.sqrt(dh)
    neg = jnp.float32(-1e30)

    # First expert visit per batch: compute token gates once, zero accumulator.
    @pl.when(e == 0)
    def _():
        z = jnp.dot(x, gw_ref[...], preferred_element_type=jnp.float32)
        z = z + gb_ref[...]
        z = z - jnp.max(z, axis=-1, keepdims=True)
        ez = jnp.exp(z)
        gates_ref[...] = ez / jnp.sum(ez, axis=-1, keepdims=True)
        acc_ref[...] = jnp.zeros_like(acc_ref)

    xb = _bf16(x)

    # One big QKV projection for all heads:  (S, D) @ (D, 3D)
    qkv = jnp.dot(xb, wqkv_ref[0], preferred_element_type=jnp.float32)
    qkv = qkv + bqkv_ref[0]
    q = qkv[:, :d_model]
    k = qkv[:, d_model:2 * d_model]
    v = qkv[:, 2 * d_model:]

    # Per-head flash-style attention: online softmax over KV tiles bounds
    # the score temporaries to (S, kv_tile) instead of a full (S, S) block.
    row_ids = lax.broadcasted_iota(jnp.int32, (seq, kv_tile), 0)
    n_kv = seq // kv_tile
    head_outs = []
    for h in range(heads):
        q_h = _bf16(q[:, h * dh:(h + 1) * dh])                     # (S, dh)
        m_i = jnp.full((seq, 1), neg, jnp.float32)
        l_i = jnp.zeros((seq, 1), jnp.float32)
        acc_h = jnp.zeros((seq, dh), jnp.float32)
        for t in range(n_kv):
            k0 = t * kv_tile
            k_h = _bf16(k[k0:k0 + kv_tile, h * dh:(h + 1) * dh])   # (tk, dh)
            v_h = _bf16(v[k0:k0 + kv_tile, h * dh:(h + 1) * dh])
            s = jnp.dot(q_h, k_h.T, preferred_element_type=jnp.float32) * scale
            col_ids = k0 + lax.broadcasted_iota(jnp.int32, (seq, kv_tile), 1)
            s = jnp.where(col_ids <= row_ids, s, neg)              # causal
            m_new = jnp.maximum(m_i, jnp.max(s, axis=-1, keepdims=True))
            alpha = jnp.exp(m_i - m_new)
            p = jnp.exp(s - m_new)
            l_i = alpha * l_i + jnp.sum(p, axis=-1, keepdims=True)
            acc_h = alpha * acc_h + jnp.dot(_bf16(p), v_h,
                                            preferred_element_type=jnp.float32)
            m_i = m_new
        head_outs.append(acc_h / l_i)
    o_cat = jnp.concatenate(head_outs, axis=-1)                    # (S, D)

    # Single output projection for all heads: (S, D) @ (D, D), bias once/expert.
    proj = jnp.dot(_bf16(o_cat), wo_ref[0], preferred_element_type=jnp.float32)
    proj = proj + bo_ref[0]

    # Gate weight for this expert (lane one-hot select; avoids dynamic lane slice).
    gates = gates_ref[...]                                         # (S, E)
    gsel = lax.broadcasted_iota(jnp.int32, gates.shape, 1) == e
    g_e = jnp.sum(jnp.where(gsel, gates, 0.0), axis=-1, keepdims=True)

    acc_ref[...] = acc_ref[...] + g_e * proj

    # Write the HBM output exactly once, after the last expert.
    @pl.when(e == n_exp - 1)
    def _():
        o_ref[0] = acc_ref[...]


def _layer_tail_kernel(x_ref, a_ref, g1_ref, b1_ref, g2_ref, b2_ref,
                       w1_ref, bb1_ref, w2_ref, bb2_ref, g3_ref, b3_ref,
                       o_ref, xn_ref, ff_ref):
    """residual + LN1 + LN2 + FFN(relu, tiled over dim_ff) + residual + LN3."""
    fi = pl.program_id(1)

    @pl.when(fi == 0)
    def _():
        xr = x_ref[...] + a_ref[...]                    # residual (+dropout1 = id)
        xr = _ln(xr, g1_ref[...], b1_ref[...])          # norm1
        xr = _ln(xr, g2_ref[...], b2_ref[...])          # norm2 (consecutive, as in ref)
        xn_ref[...] = xr
        ff_ref[...] = jnp.zeros_like(ff_ref)

    h = jnp.dot(_bf16(xn_ref[...]), w1_ref[...],
                preferred_element_type=jnp.float32) + bb1_ref[...]
    h = jnp.maximum(h, 0.0)                             # linear1 chunk + relu
    ff_ref[...] += jnp.dot(_bf16(h), w2_ref[...],
                           preferred_element_type=jnp.float32)

    @pl.when(fi == pl.num_programs(1) - 1)
    def _():
        y = xn_ref[...] + ff_ref[...] + bb2_ref[...]    # linear2 bias once (+dropout3=id)
        o_ref[...] = _ln(y, g3_ref[...], b3_ref[...])   # norm3


def _logits_kernel(x_ref, g_ref, b_ref, w_ref, bo_ref, o_ref):
    x = _ln(x_ref[...], g_ref[...], b_ref[...])         # decoder final LayerNorm
    z = jnp.dot(_bf16(x), w_ref[...], preferred_element_type=jnp.float32)
    z = z + bo_ref[...]                                 # padded vocab cols carry -1e30 bias
    z = z - jnp.max(z, axis=-1, keepdims=True)
    o_ref[...] = z - jnp.log(jnp.sum(jnp.exp(z), axis=-1, keepdims=True))
    # TODO(synk): for production vocab sizes tile the vocab axis on the grid
    # with a two-pass / online logsumexp instead of a full-vocab weight block.


# ---------------------------------------------------------------------------
# kernel wrappers (grids + BlockSpecs)
# ---------------------------------------------------------------------------

def moe_attention(x, lp, nhead):
    B, S, D = x.shape
    E = lp['wqkv'].shape[0]
    kvt = _kv_tile(S)
    kernel = functools.partial(_moe_attn_kernel, nhead=nhead, kv_tile=kvt)
    # TODO(synk): for very long sequences on v7x, add a q-tile grid axis and
    # flatten it with batch as "parallel" so both TensorCores stay busy.
    return pl.pallas_call(
        kernel,
        out_shape=jax.ShapeDtypeStruct((B, S, D), jnp.float32),
        grid=(B, E),
        in_specs=[
            pl.BlockSpec((1, S, D), lambda b, e: (b, 0, 0)),
            pl.BlockSpec((1, D, 3 * D), lambda b, e: (e, 0, 0)),
            pl.BlockSpec((1, 1, 3 * D), lambda b, e: (e, 0, 0)),
            pl.BlockSpec((1, D, D), lambda b, e: (e, 0, 0)),
            pl.BlockSpec((1, 1, D), lambda b, e: (e, 0, 0)),
            pl.BlockSpec((D, E), lambda b, e: (0, 0)),
            pl.BlockSpec((1, E), lambda b, e: (0, 0)),
        ],
        out_specs=pl.BlockSpec((1, S, D), lambda b, e: (b, 0, 0)),
        scratch_shapes=[pltpu.VMEM((S, D), jnp.float32),   # expert-mixture accumulator
                        pltpu.VMEM((S, E), jnp.float32)],  # token gates
        compiler_params=pltpu.CompilerParams(
            dimension_semantics=("parallel", "arbitrary"),
            vmem_limit_bytes=_VMEM_LIMIT),
    )(x, lp['wqkv'], lp['bqkv'], lp['wo'], lp['bo'], lp['gate_w'], lp['gate_b'])


def layer_tail(x, attn, lp):
    m, d = x.shape
    f = lp['w1'].shape[1]
    tf = _ff_tile(f)
    tm = _pick_row_tile(m, 4 * (5 * d + tf))
    m_pad = _round_up(m, tm)
    xp = _pad_rows(x, m_pad)
    ap = _pad_rows(attn, m_pad)
    ws = lambda i, j: (0, 0)
    out = pl.pallas_call(
        _layer_tail_kernel,
        out_shape=jax.ShapeDtypeStruct((m_pad, d), jnp.float32),
        grid=(m_pad // tm, f // tf),
        in_specs=[
            pl.BlockSpec((tm, d), lambda i, j: (i, 0)),
            pl.BlockSpec((tm, d), lambda i, j: (i, 0)),
            pl.BlockSpec((1, d), ws), pl.BlockSpec((1, d), ws),
            pl.BlockSpec((1, d), ws), pl.BlockSpec((1, d), ws),
            pl.BlockSpec((d, tf), lambda i, j: (0, j)),
            pl.BlockSpec((1, tf), lambda i, j: (0, j)),
            pl.BlockSpec((tf, d), lambda i, j: (j, 0)),
            pl.BlockSpec((1, d), ws),
            pl.BlockSpec((1, d), ws), pl.BlockSpec((1, d), ws),
        ],
        out_specs=pl.BlockSpec((tm, d), lambda i, j: (i, 0)),
        scratch_shapes=[pltpu.VMEM((tm, d), jnp.float32),   # normalized input
                        pltpu.VMEM((tm, d), jnp.float32)],  # FFN accumulator
        compiler_params=pltpu.CompilerParams(
            dimension_semantics=("parallel", "arbitrary"),
            vmem_limit_bytes=_VMEM_LIMIT),
    )(xp, ap,
      lp['ln1_g'].reshape(1, -1), lp['ln1_b'].reshape(1, -1),
      lp['ln2_g'].reshape(1, -1), lp['ln2_b'].reshape(1, -1),
      lp['w1'], lp['b1'].reshape(1, -1),
      lp['w2'], lp['b2'].reshape(1, -1),
      lp['ln3_g'].reshape(1, -1), lp['ln3_b'].reshape(1, -1))
    return out[:m]


def logits_logsoftmax(x, g, b, w, bo):
    m, d = x.shape
    vp = w.shape[1]                       # vocab padded to a multiple of 128
    tm = _pick_row_tile(m, 4 * (d + 2 * vp))
    m_pad = _round_up(m, tm)
    xp = _pad_rows(x, m_pad)
    ws = lambda i: (0, 0)
    out = pl.pallas_call(
        _logits_kernel,
        out_shape=jax.ShapeDtypeStruct((m_pad, vp), jnp.float32),
        grid=(m_pad // tm,),
        in_specs=[
            pl.BlockSpec((tm, d), lambda i: (i, 0)),
            pl.BlockSpec((1, d), ws), pl.BlockSpec((1, d), ws),
            pl.BlockSpec((d, vp), ws), pl.BlockSpec((1, vp), ws),
        ],
        out_specs=pl.BlockSpec((tm, vp), lambda i: (i, 0)),
        compiler_params=pltpu.CompilerParams(
            dimension_semantics=("parallel",), vmem_limit_bytes=_VMEM_LIMIT),
    )(xp, g.reshape(1, -1), b.reshape(1, -1), w, bo.reshape(1, -1))
    return out[:m]


# ---------------------------------------------------------------------------
# params + model glue
# ---------------------------------------------------------------------------

def init_params(key, ntoken, d_model, nhead, num_layers, dim_ff,
                num_experts=4, max_len=512):
    D, E = d_model, num_experts
    vpad = _round_up(ntoken, 128)        # lane-dense vocab padding

    def xavier(k, shape):
        bound = math.sqrt(6.0 / (shape[0] + shape[1]))
        return jax.random.uniform(k, shape, jnp.float32, -bound, bound)

    keys = iter(jax.random.split(key, 4 + num_layers * (4 * E + 3)))
    params = {}
    params['emb'] = xavier(next(keys), (ntoken, D))

    # positional encoding buffer, shape (max_len, D)
    position = jnp.arange(max_len, dtype=jnp.float32)[:, None]
    div_term = jnp.exp(jnp.arange(0, D, 2, dtype=jnp.float32)
                       * (-math.log(10000.0) / D))
    pe = jnp.zeros((max_len, D), jnp.float32)
    pe = pe.at[:, 0::2].set(jnp.sin(position * div_term))
    pe = pe.at[:, 1::2].set(jnp.cos(position * div_term))
    params['pe'] = pe

    layers = []
    for _ in range(num_layers):
        lp = {}
        wqkv, wo = [], []
        for _e in range(E):
            wq = xavier(next(keys), (D, D))
            wk = xavier(next(keys), (D, D))
            wv = xavier(next(keys), (D, D))
            wqkv.append(jnp.concatenate([wq, wk, wv], axis=1))   # (D, 3D)
            wo.append(xavier(next(keys), (D, D)))
        lp['wqkv'] = _bf16(jnp.stack(wqkv))                      # (E, D, 3D)
        lp['bqkv'] = jnp.zeros((E, 1, 3 * D), jnp.float32)
        lp['wo'] = _bf16(jnp.stack(wo))                          # (E, D, D)
        lp['bo'] = jnp.zeros((E, 1, D), jnp.float32)
        lp['gate_w'] = xavier(next(keys), (D, E))
        lp['gate_b'] = jnp.zeros((1, E), jnp.float32)
        lp['w1'] = _bf16(xavier(next(keys), (D, dim_ff)))
        lp['b1'] = jnp.zeros((dim_ff,), jnp.float32)
        lp['w2'] = _bf16(xavier(next(keys), (dim_ff, D)))
        lp['b2'] = jnp.zeros((D,), jnp.float32)
        for n in ('ln1', 'ln2', 'ln3'):
            lp[n + '_g'] = jnp.ones((D,), jnp.float32)
            lp[n + '_b'] = jnp.zeros((D,), jnp.float32)
        layers.append(lp)
    params['layers'] = layers
    params['dec_norm_g'] = jnp.ones((D,), jnp.float32)
    params['dec_norm_b'] = jnp.zeros((D,), jnp.float32)

    out_w = xavier(next(keys), (D, ntoken))
    params['out_w'] = _bf16(jnp.pad(out_w, ((0, 0), (0, vpad - ntoken))))
    out_b = jnp.full((vpad,), -1e30, jnp.float32).at[:ntoken].set(0.0)
    params['out_b'] = out_b
    return params


def transformer_lm_forward(params, trg, src, *, d_model, nhead, ntoken):
    # trg is accepted (reference signature) but unused, just like the reference.
    del trg
    S, B = src.shape
    D = d_model

    # embedding + positional encoding (dropout = identity), batch-first layout
    # TODO(synk): embedding gather / PE add left to XLA (arbitrary-index gather).
    x = jnp.take(params['emb'], src.T, axis=0) * math.sqrt(D)          # (B, S, D)
    x = x + params['pe'][None, :S, :]

    aux_total = jnp.float32(0.0)   # TODO(synk): aux_loss of the undefined MoE class
    for lp in params['layers']:
        attn = moe_attention(x, lp, nhead)                              # (B, S, D)
        x = layer_tail(x.reshape(B * S, D), attn.reshape(B * S, D),
                       lp).reshape(B, S, D)

    logits = logits_logsoftmax(x.reshape(B * S, D),
                               params['dec_norm_g'], params['dec_norm_b'],
                               params['out_w'], params['out_b'])        # (B*S, Vpad)
    logp = logits[:, :ntoken].reshape(B, S, ntoken).transpose(1, 0, 2)  # (S, B, V)
    return logp, aux_total


# ---------------------------------------------------------------------------
# main
# ---------------------------------------------------------------------------

if __name__ == "__main__":
    ntoken, d_model, nhead, num_layers, dim_ff = 50, 32, 4, 2, 64
    S, B = 8, 2

    key = jax.random.PRNGKey(0)
    pkey, tkey, skey = jax.random.split(key, 3)
    params = init_params(pkey, ntoken, d_model, nhead, num_layers, dim_ff)

    src = jax.random.randint(skey, (S, B), 0, ntoken, dtype=jnp.int32)
    trg = jax.random.randint(tkey, (S, B), 0, ntoken, dtype=jnp.int32)

    fwd = jax.jit(functools.partial(transformer_lm_forward,
                                    d_model=d_model, nhead=nhead, ntoken=ntoken))
    out, aux = fwd(params, trg, src)
    jax.block_until_ready(out)
    jax.block_until_ready(aux)

    assert out.shape == (S, B, ntoken)
    assert bool(jnp.all(jnp.isfinite(out)))
    print("KERNEL_OK")
</pallas_src>

<mosaic_0001>
module attributes {stable_mosaic.version = 11 : i64} {
  func.func @_logits_kernel(%arg0: i32, %arg1: memref<16x32xf32, #tpu.memory_space<vmem>>, %arg2: memref<1x32xf32, #tpu.memory_space<vmem>>, %arg3: memref<1x32xf32, #tpu.memory_space<vmem>>, %arg4: memref<32x128xbf16, #tpu.memory_space<vmem>>, %arg5: memref<1x128xf32, #tpu.memory_space<vmem>>, %arg6: memref<16x128xf32, #tpu.memory_space<vmem>>) attributes {dimension_semantics = [#tpu.dimension_semantics<parallel>], iteration_bounds = array<i64: 1>, scalar_prefetch = 0 : i64, scratch_operands = 0 : i64, tpu.core_type = #tpu.core_type<tc>, window_params = [{transform_indices = @transform_0, window_bounds = array<i64: 16, 32>}, {pipeline_mode = #tpu.pipeline_mode<synchronous>, transform_indices = @transform_1, window_bounds = array<i64: 1, 32>}, {pipeline_mode = #tpu.pipeline_mode<synchronous>, transform_indices = @transform_2, window_bounds = array<i64: 1, 32>}, {pipeline_mode = #tpu.pipeline_mode<synchronous>, transform_indices = @transform_3, window_bounds = array<i64: 32, 128>}, {pipeline_mode = #tpu.pipeline_mode<synchronous>, transform_indices = @transform_4, window_bounds = array<i64: 1, 128>}, {transform_indices = @transform_5, window_bounds = array<i64: 16, 128>}]} {
    %c0 = arith.constant 0 : index
    %c0_0 = arith.constant 0 : index
    %0 = vector.load %arg1[%c0, %c0_0] : memref<16x32xf32, #tpu.memory_space<vmem>>, vector<16x32xf32>
    %c0_1 = arith.constant 0 : index
    %c0_2 = arith.constant 0 : index
    %1 = vector.load %arg2[%c0_1, %c0_2] : memref<1x32xf32, #tpu.memory_space<vmem>>, vector<1x32xf32>
    %c0_3 = arith.constant 0 : index
    %c0_4 = arith.constant 0 : index
    %2 = vector.load %arg3[%c0_3, %c0_4] : memref<1x32xf32, #tpu.memory_space<vmem>>, vector<1x32xf32>
    %cst = arith.constant dense<0.000000e+00> : vector<16xf32>
    %3 = vector.multi_reduction <add>, %0, %cst [1] : vector<16x32xf32> to vector<16xf32>
    %4 = vector.shape_cast %3 : vector<16xf32> to vector<16x1xf32>
    %cst_5 = arith.constant 3.200000e+01 : f32
    %5 = vector.broadcast %cst_5 : f32 to vector<16x1xf32>
    %6 = arith.divf %4, %5 : vector<16x1xf32>
    %7 = vector.broadcast %6 : vector<16x1xf32> to vector<16x32xf32>
    %8 = arith.subf %0, %7 : vector<16x32xf32>
    %9 = arith.mulf %8, %8 : vector<16x32xf32>
    %cst_6 = arith.constant dense<0.000000e+00> : vector<16xf32>
    %10 = vector.multi_reduction <add>, %9, %cst_6 [1] : vector<16x32xf32> to vector<16xf32>
    %11 = vector.shape_cast %10 : vector<16xf32> to vector<16x1xf32>
    %cst_7 = arith.constant 3.200000e+01 : f32
    %12 = vector.broadcast %cst_7 : f32 to vector<16x1xf32>
    %13 = arith.divf %11, %12 : vector<16x1xf32>
    %14 = vector.broadcast %6 : vector<16x1xf32> to vector<16x32xf32>
    %15 = arith.subf %0, %14 : vector<16x32xf32>
    %cst_8 = arith.constant 9.99999974E-6 : f32
    %16 = vector.broadcast %cst_8 : f32 to vector<16x1xf32>
    %17 = arith.addf %13, %16 : vector<16x1xf32>
    %18 = math.rsqrt %17 : vector<16x1xf32>
    %19 = vector.broadcast %18 : vector<16x1xf32> to vector<16x32xf32>
    %20 = arith.mulf %15, %19 : vector<16x32xf32>
    %21 = vector.broadcast %1 : vector<1x32xf32> to vector<16x32xf32>
    %22 = arith.mulf %20, %21 : vector<16x32xf32>
    %23 = vector.broadcast %2 : vector<1x32xf32> to vector<16x32xf32>
    %24 = arith.addf %22, %23 : vector<16x32xf32>
    %25 = arith.truncf %24 : vector<16x32xf32> to vector<16x32xbf16>
    %c0_9 = arith.constant 0 : index
    %c0_10 = arith.constant 0 : index
    %26 = vector.load %arg4[%c0_9, %c0_10] : memref<32x128xbf16, #tpu.memory_space<vmem>>, vector<32x128xbf16>
    %cst_11 = arith.constant dense<0.000000e+00> : vector<16x128xf32>
    %27 = tpu.matmul %25, %26, %cst_11 {dimension_numbers = #tpu.dot_dimension_numbers<[1], [0], [0], [1], [0, 0, 1, 1], [], []>} : vector<16x32xbf16>, vector<32x128xbf16>, vector<16x128xf32> -> vector<16x128xf32>
    %c0_12 = arith.constant 0 : index
    %c0_13 = arith.constant 0 : index
    %28 = vector.load %arg5[%c0_12, %c0_13] : memref<1x128xf32, #tpu.memory_space<vmem>>, vector<1x128xf32>
    %29 = vector.broadcast %28 : vector<1x128xf32> to vector<16x128xf32>
    %30 = arith.addf %27, %29 : vector<16x128xf32>
    %cst_14 = arith.constant dense<0xFF800000> : vector<16xf32>
    %31 = vector.multi_reduction <maximumf>, %30, %cst_14 [1] : vector<16x128xf32> to vector<16xf32>
    %32 = vector.shape_cast %31 : vector<16xf32> to vector<16x1xf32>
    %33 = vector.broadcast %32 : vector<16x1xf32> to vector<16x128xf32>
    %34 = arith.subf %30, %33 : vector<16x128xf32>
    %35 = math.exp %34 : vector<16x128xf32>
    %cst_15 = arith.constant dense<0.000000e+00> : vector<16xf32>
    %36 = vector.multi_reduction <add>, %35, %cst_15 [1] : vector<16x128xf32> to vector<16xf32>
    %37 = vector.shape_cast %36 : vector<16xf32> to vector<16x1xf32>
    %38 = math.log %37 : vector<16x1xf32>
    %39 = vector.broadcast %38 : vector<16x1xf32> to vector<16x128xf32>
    %40 = arith.subf %34, %39 : vector<16x128xf32>
    %c0_16 = arith.constant 0 : index
    %c0_17 = arith.constant 0 : index
    %41 = vector.load %arg6[%c0_16, %c0_17] : memref<16x128xf32, #tpu.memory_space<vmem>>, vector<16x128xf32>
    tpu.vector_store %arg6[%c0_16, %c0_17], %40 {strides = array<i32>} : memref<16x128xf32, #tpu.memory_space<vmem>>, vector<16x128xf32>,
    return
  }
  func.func @transform_0(%arg0: i32) -> (i32, i32) {
    %c0_i32 = arith.constant 0 : i32
    %c0_i32_0 = arith.constant 0 : i32
    return %arg0, %c0_i32 : i32, i32
  }
  func.func @transform_1(%arg0: i32) -> (i32, i32) {
    %c0_i32 = arith.constant 0 : i32
    %c0_i32_0 = arith.constant 0 : i32
    %c0_i32_1 = arith.constant 0 : i32
    return %c0_i32, %c0_i32_0 : i32, i32
  }
  func.func @transform_2(%arg0: i32) -> (i32, i32) {
    %c0_i32 = arith.constant 0 : i32
    %c0_i32_0 = arith.constant 0 : i32
    %c0_i32_1 = arith.constant 0 : i32
    return %c0_i32, %c0_i32_0 : i32, i32
  }
  func.func @transform_3(%arg0: i32) -> (i32, i32) {
    %c0_i32 = arith.constant 0 : i32
    %c0_i32_0 = arith.constant 0 : i32
    %c0_i32_1 = arith.constant 0 : i32
    return %c0_i32, %c0_i32_0 : i32, i32
  }
  func.func @transform_4(%arg0: i32) -> (i32, i32) {
    %c0_i32 = arith.constant 0 : i32
    %c0_i32_0 = arith.constant 0 : i32
    %c0_i32_1 = arith.constant 0 : i32
    return %c0_i32, %c0_i32_0 : i32, i32
  }
  func.func @transform_5(%arg0: i32) -> (i32, i32) {
    %c0_i32 = arith.constant 0 : i32
    %c0_i32_0 = arith.constant 0 : i32
    return %arg0, %c0_i32 : i32, i32
  }
}

module attributes {stable_mosaic.version = 11 : i64} {
  func.func @_layer_tail_kernel(%arg0: i32, %arg1: i32, %arg2: memref<16x32xf32, #tpu.memory_space<vmem>>, %arg3: memref<16x32xf32, #tpu.memory_space<vmem>>, %arg4: memref<1x32xf32, #tpu.memory_space<vmem>>, %arg5: memref<1x32xf32, #tpu.memory_space<vmem>>, %arg6: memref<1x32xf32, #tpu.memory_space<vmem>>, %arg7: memref<1x32xf32, #tpu.memory_space<vmem>>, %arg8: memref<32x64xbf16, #tpu.memory_space<vmem>>, %arg9: memref<1x64xf32, #tpu.memory_space<vmem>>, %arg10: memref<64x32xbf16, #tpu.memory_space<vmem>>, %arg11: memref<1x32xf32, #tpu.memory_space<vmem>>, %arg12: memref<1x32xf32, #tpu.memory_space<vmem>>, %arg13: memref<1x32xf32, #tpu.memory_space<vmem>>, %arg14: memref<16x32xf32, #tpu.memory_space<vmem>>, %arg15: memref<16x32xf32, #tpu.memory_space<vmem>>, %arg16: memref<16x32xf32, #tpu.memory_space<vmem>>) attributes {dimension_semantics = [#tpu.dimension_semantics<parallel>, #tpu.dimension_semantics<arbitrary>], iteration_bounds = array<i64: 1, 1>, scalar_prefetch = 0 : i64, scratch_operands = 2 : i64, tpu.core_type = #tpu.core_type<tc>, window_params = [{transform_indices = @transform_0, window_bounds = array<i64: 16, 32>}, {transform_indices = @transform_1, window_bounds = array<i64: 16, 32>}, {pipeline_mode = #tpu.pipeline_mode<synchronous>, transform_indices = @transform_2, window_bounds = array<i64: 1, 32>}, {pipeline_mode = #tpu.pipeline_mode<synchronous>, transform_indices = @transform_3, window_bounds = array<i64: 1, 32>}, {pipeline_mode = #tpu.pipeline_mode<synchronous>, transform_indices = @transform_4, window_bounds = array<i64: 1, 32>}, {pipeline_mode = #tpu.pipeline_mode<synchronous>, transform_indices = @transform_5, window_bounds = array<i64: 1, 32>}, {transform_indices = @transform_6, window_bounds = array<i64: 32, 64>}, {transform_indices = @transform_7, window_bounds = array<i64: 1, 64>}, {transform_indices = @transform_8, window_bounds = array<i64: 64, 32>}, {pipeline_mode = #tpu.pipeline_mode<synchronous>, transform_indices = @transform_9, window_bounds = array<i64: 1, 32>}, {pipeline_mode = #tpu.pipeline_mode<synchronous>, transform_indices = @transform_10, window_bounds = array<i64: 1, 32>}, {pipeline_mode = #tpu.pipeline_mode<synchronous>, transform_indices = @transform_11, window_bounds = array<i64: 1, 32>}, {transform_indices = @transform_12, window_bounds = array<i64: 16, 32>}]} {
    %c0_i32 = arith.constant 0 : i32
    %0 = arith.cmpi eq, %arg1, %c0_i32 : i32
    %1 = arith.extui %0 : i1 to i32
    %c0_i32_0 = arith.constant 0 : i32
    %2 = arith.cmpi ne, %1, %c0_i32_0 : i32
    scf.if %2 {
      %c0_16 = arith.constant 0 : index
      %c0_17 = arith.constant 0 : index
      %21 = vector.load %arg2[%c0_16, %c0_17] : memref<16x32xf32, #tpu.memory_space<vmem>>, vector<16x32xf32>
      %c0_18 = arith.constant 0 : index
      %c0_19 = arith.constant 0 : index
      %22 = vector.load %arg3[%c0_18, %c0_19] : memref<16x32xf32, #tpu.memory_space<vmem>>, vector<16x32xf32>
      %23 = arith.addf %21, %22 : vector<16x32xf32>
      %c0_20 = arith.constant 0 : index
      %c0_21 = arith.constant 0 : index
      %24 = vector.load %arg4[%c0_20, %c0_21] : memref<1x32xf32, #tpu.memory_space<vmem>>, vector<1x32xf32>
      %c0_22 = arith.constant 0 : index
      %c0_23 = arith.constant 0 : index
      %25 = vector.load %arg5[%c0_22, %c0_23] : memref<1x32xf32, #tpu.memory_space<vmem>>, vector<1x32xf32>
      %cst_24 = arith.constant dense<0.000000e+00> : vector<16xf32>
      %26 = vector.multi_reduction <add>, %23, %cst_24 [1] : vector<16x32xf32> to vector<16xf32>
      %27 = vector.shape_cast %26 : vector<16xf32> to vector<16x1xf32>
      %cst_25 = arith.constant 3.200000e+01 : f32
      %28 = vector.broadcast %cst_25 : f32 to vector<16x1xf32>
      %29 = arith.divf %27, %28 : vector<16x1xf32>
      %30 = vector.broadcast %29 : vector<16x1xf32> to vector<16x32xf32>
      %31 = arith.subf %23, %30 : vector<16x32xf32>
      %32 = arith.mulf %31, %31 : vector<16x32xf32>
      %cst_26 = arith.constant dense<0.000000e+00> : vector<16xf32>
      %33 = vector.multi_reduction <add>, %32, %cst_26 [1] : vector<16x32xf32> to vector<16xf32>
      %34 = vector.shape_cast %33 : vector<16xf32> to vector<16x1xf32>
      %cst_27 = arith.constant 3.200000e+01 : f32
      %35 = vector.broadcast %cst_27 : f32 to vector<16x1xf32>
      %36 = arith.divf %34, %35 : vector<16x1xf32>
      %37 = vector.broadcast %29 : vector<16x1xf32> to vector<16x32xf32>
      %38 = arith.subf %23, %37 : vector<16x32xf32>
      %cst_28 = arith.constant 9.99999974E-6 : f32
      %39 = vector.broadcast %cst_28 : f32 to vector<16x1xf32>
      %40 = arith.addf %36, %39 : vector<16x1xf32>
      %41 = math.rsqrt %40 : vector<16x1xf32>
      %42 = vector.broadcast %41 : vector<16x1xf32> to vector<16x32xf32>
      %43 = arith.mulf %38, %42 : vector<16x32xf32>
      %44 = vector.broadcast %24 : vector<1x32xf32> to vector<16x32xf32>
      %45 = arith.mulf %43, %44 : vector<16x32xf32>
      %46 = vector.broadcast %25 : vector<1x32xf32> to vector<16x32xf32>
      %47 = arith.addf %45, %46 : vector<16x32xf32>
      %c0_29 = arith.constant 0 : index
      %c0_30 = arith.constant 0 : index
      %48 = vector.load %arg6[%c0_29, %c0_30] : memref<1x32xf32, #tpu.memory_space<vmem>>, vector<1x32xf32>
      %c0_31 = arith.constant 0 : index
      %c0_32 = arith.constant 0 : index
      %49 = vector.load %arg7[%c0_31, %c0_32] : memref<1x32xf32, #tpu.memory_space<vmem>>, vector<1x32xf32>
      %cst_33 = arith.constant dense<0.000000e+00> : vector<16xf32>
      %50 = vector.multi_reduction <add>, %47, %cst_33 [1] : vector<16x32xf32> to vector<16xf32>
      %51 = vector.shape_cast %50 : vector<16xf32> to vector<16x1xf32>
      %cst_34 = arith.constant 3.200000e+01 : f32
      %52 = vector.broadcast %cst_34 : f32 to vector<16x1xf32>
      %53 = arith.divf %51, %52 : vector<16x1xf32>
      %54 = vector.broadcast %53 : vector<16x1xf32> to vector<16x32xf32>
      %55 = arith.subf %47, %54 : vector<16x32xf32>
      %56 = arith.mulf %55, %55 : vector<16x32xf32>
      %cst_35 = arith.constant dense<0.000000e+00> : vector<16xf32>
      %57 = vector.multi_reduction <add>, %56, %cst_35 [1] : vector<16x32xf32> to vector<16xf32>
      %58 = vector.shape_cast %57 : vector<16xf32> to vector<16x1xf32>
      %cst_36 = arith.constant 3.200000e+01 : f32
      %59 = vector.broadcast %cst_36 : f32 to vector<16x1xf32>
      %60 = arith.divf %58, %59 : vector<16x1xf32>
      %61 = vector.broadcast %53 : vector<16x1xf32> to vector<16x32xf32>
      %62 = arith.subf %47, %61 : vector<16x32xf32>
      %cst_37 = arith.constant 9.99999974E-6 : f32
      %63 = vector.broadcast %cst_37 : f32 to vector<16x1xf32>
      %64 = arith.addf %60, %63 : vector<16x1xf32>
      %65 = math.rsqrt %64 : vector<16x1xf32>
      %66 = vector.broadcast %65 : vector<16x1xf32> to vector<16x32xf32>
      %67 = arith.mulf %62, %66 : vector<16x32xf32>
      %68 = vector.broadcast %48 : vector<1x32xf32> to vector<16x32xf32>
      %69 = arith.mulf %67, %68 : vector<16x32xf32>
      %70 = vector.broadcast %49 : vector<1x32xf32> to vector<16x32xf32>
      %71 = arith.addf %69, %70 : vector<16x32xf32>
      %c0_38 = arith.constant 0 : index
      %c0_39 = arith.constant 0 : index
      %72 = vector.load %arg15[%c0_38, %c0_39] : memref<16x32xf32, #tpu.memory_space<vmem>>, vector<16x32xf32>
      tpu.vector_store %arg15[%c0_38, %c0_39], %71 {strides = array<i32>} : memref<16x32xf32, #tpu.memory_space<vmem>>, vector<16x32xf32>,
      %cst_40 = arith.constant 0.000000e+00 : f32
      %73 = vector.broadcast %cst_40 : f32 to vector<16x32xf32>
      %c0_41 = arith.constant 0 : index
      %c0_42 = arith.constant 0 : index
      %74 = vector.load %arg16[%c0_41, %c0_42] : memref<16x32xf32, #tpu.memory_space<vmem>>, vector<16x32xf32>
      tpu.vector_store %arg16[%c0_41, %c0_42], %73 {strides = array<i32>} : memref<16x32xf32, #tpu.memory_space<vmem>>, vector<16x32xf32>,
    } else {
    }
    %c0 = arith.constant 0 : index
    %c0_1 = arith.constant 0 : index
    %3 = vector.load %arg15[%c0, %c0_1] : memref<16x32xf32, #tpu.memory_space<vmem>>, vector<16x32xf32>
    %4 = arith.truncf %3 : vector<16x32xf32> to vector<16x32xbf16>
    %c0_2 = arith.constant 0 : index
    %c0_3 = arith.constant 0 : index
    %5 = vector.load %arg8[%c0_2, %c0_3] : memref<32x64xbf16, #tpu.memory_space<vmem>>, vector<32x64xbf16>
    %cst = arith.constant dense<0.000000e+00> : vector<16x64xf32>
    %6 = tpu.matmul %4, %5, %cst {dimension_numbers = #tpu.dot_dimension_numbers<[1], [0], [0], [1], [0, 0, 1, 1], [], []>} : vector<16x32xbf16>, vector<32x64xbf16>, vector<16x64xf32> -> vector<16x64xf32>
    %c0_4 = arith.constant 0 : index
    %c0_5 = arith.constant 0 : index
    %7 = vector.load %arg9[%c0_4, %c0_5] : memref<1x64xf32, #tpu.memory_space<vmem>>, vector<1x64xf32>
    %8 = vector.broadcast %7 : vector<1x64xf32> to vector<16x64xf32>
    %9 = arith.addf %6, %8 : vector<16x64xf32>
    %cst_6 = arith.constant 0.000000e+00 : f32
    %10 = vector.broadcast %cst_6 : f32 to vector<16x64xf32>
    %11 = arith.maximumf %9, %10 : vector<16x64xf32>
    %c0_7 = arith.constant 0 : index
    %c0_8 = arith.constant 0 : index
    %12 = vector.load %arg16[%c0_7, %c0_8] : memref<16x32xf32, #tpu.memory_space<vmem>>, vector<16x32xf32>
    %13 = arith.truncf %11 : vector<16x64xf32> to vector<16x64xbf16>
    %c0_9 = arith.constant 0 : index
    %c0_10 = arith.constant 0 : index
    %14 = vector.load %arg10[%c0_9, %c0_10] : memref<64x32xbf16, #tpu.memory_space<vmem>>, vector<64x32xbf16>
    %cst_11 = arith.constant dense<0.000000e+00> : vector<16x32xf32>
    %15 = tpu.matmul %13, %14, %cst_11 {dimension_numbers = #tpu.dot_dimension_numbers<[1], [0], [0], [1], [0, 0, 1, 1], [], []>} : vector<16x64xbf16>, vector<64x32xbf16>, vector<16x32xf32> -> vector<16x32xf32>
    %16 = arith.addf %12, %15 : vector<16x32xf32>
    %c0_12 = arith.constant 0 : index
    %c0_13 = arith.constant 0 : index
    %17 = vector.load %arg16[%c0_12, %c0_13] : memref<16x32xf32, #tpu.memory_space<vmem>>, vector<16x32xf32>
    tpu.vector_store %arg16[%c0_12, %c0_13], %16 {strides = array<i32>} : memref<16x32xf32, #tpu.memory_space<vmem>>, vector<16x32xf32>,
    %c0_i32_14 = arith.constant 0 : i32
    %18 = arith.cmpi eq, %arg1, %c0_i32_14 : i32
    %19 = arith.extui %18 : i1 to i32
    %c0_i32_15 = arith.constant 0 : i32
    %20 = arith.cmpi ne, %19, %c0_i32_15 : i32
    scf.if %20 {
      %c0_16 = arith.constant 0 : index
      %c0_17 = arith.constant 0 : index
      %21 = vector.load %arg15[%c0_16, %c0_17] : memref<16x32xf32, #tpu.memory_space<vmem>>, vector<16x32xf32>
      %c0_18 = arith.constant 0 : index
      %c0_19 = arith.constant 0 : index
      %22 = vector.load %arg16[%c0_18, %c0_19] : memref<16x32xf32, #tpu.memory_space<vmem>>, vector<16x32xf32>
      %23 = arith.addf %21, %22 : vector<16x32xf32>
      %c0_20 = arith.constant 0 : index
      %c0_21 = arith.constant 0 : index
      %24 = vector.load %arg11[%c0_20, %c0_21] : memref<1x32xf32, #tpu.memory_space<vmem>>, vector<1x32xf32>
      %25 = vector.broadcast %24 : vector<1x32xf32> to vector<16x32xf32>
      %26 = arith.addf %23, %25 : vector<16x32xf32>
      %c0_22 = arith.constant 0 : index
      %c0_23 = arith.constant 0 : index
      %27 = vector.load %arg12[%c0_22, %c0_23] : memref<1x32xf32, #tpu.memory_space<vmem>>, vector<1x32xf32>
      %c0_24 = arith.constant 0 : index
      %c0_25 = arith.constant 0 : index
      %28 = vector.load %arg13[%c0_24, %c0_25] : memref<1x32xf32, #tpu.memory_space<vmem>>, vector<1x32xf32>
      %cst_26 = arith.constant dense<0.000000e+00> : vector<16xf32>
      %29 = vector.multi_reduction <add>, %26, %cst_26 [1] : vector<16x32xf32> to vector<16xf32>
      %30 = vector.shape_cast %29 : vector<16xf32> to vector<16x1xf32>
      %cst_27 = arith.constant 3.200000e+01 : f32
      %31 = vector.broadcast %cst_27 : f32 to vector<16x1xf32>
      %32 = arith.divf %30, %31 : vector<16x1xf32>
      %33 = vector.broadcast %32 : vector<16x1xf32> to vector<16x32xf32>
      %34 = arith.subf %26, %33 : vector<16x32xf32>
      %35 = arith.mulf %34, %34 : vector<16x32xf32>
      %cst_28 = arith.constant dense<0.000000e+00> : vector<16xf32>
      %36 = vector.multi_reduction <add>, %35, %cst_28 [1] : vector<16x32xf32> to vector<16xf32>
      %37 = vector.shape_cast %36 : vector<16xf32> to vector<16x1xf32>
      %cst_29 = arith.constant 3.200000e+01 : f32
      %38 = vector.broadcast %cst_29 : f32 to vector<16x1xf32>
      %39 = arith.divf %37, %38 : vector<16x1xf32>
      %40 = vector.broadcast %32 : vector<16x1xf32> to vector<16x32xf32>
      %41 = arith.subf %26, %40 : vector<16x32xf32>
      %cst_30 = arith.constant 9.99999974E-6 : f32
      %42 = vector.broadcast %cst_30 : f32 to vector<16x1xf32>
      %43 = arith.addf %39, %42 : vector<16x1xf32>
      %44 = math.rsqrt %43 : vector<16x1xf32>
      %45 = vector.broadcast %44 : vector<16x1xf32> to vector<16x32xf32>
      %46 = arith.mulf %41, %45 : vector<16x32xf32>
      %47 = vector.broadcast %27 : vector<1x32xf32> to vector<16x32xf32>
      %48 = arith.mulf %46, %47 : vector<16x32xf32>
      %49 = vector.broadcast %28 : vector<1x32xf32> to vector<16x32xf32>
      %50 = arith.addf %48, %49 : vector<16x32xf32>
      %c0_31 = arith.constant 0 : index
      %c0_32 = arith.constant 0 : index
      %51 = vector.load %arg14[%c0_31, %c0_32] : memref<16x32xf32, #tpu.memory_space<vmem>>, vector<16x32xf32>
      tpu.vector_store %arg14[%c0_31, %c0_32], %50 {strides = array<i32>} : memref<16x32xf32, #tpu.memory_space<vmem>>, vector<16x32xf32>,
    } else {
    }
    return
  }
  func.func @transform_0(%arg0: i32, %arg1: i32) -> (i32, i32) {
    %c0_i32 = arith.constant 0 : i32
    %c0_i32_0 = arith.constant 0 : i32
    return %arg0, %c0_i32 : i32, i32
  }
  func.func @transform_1(%arg0: i32, %arg1: i32) -> (i32, i32) {
    %c0_i32 = arith.constant 0 : i32
    %c0_i32_0 = arith.constant 0 : i32
    return %arg0, %c0_i32 : i32, i32
  }
  func.func @transform_2(%arg0: i32, %arg1: i32) -> (i32, i32) {
    %c0_i32 = arith.constant 0 : i32
    %c0_i32_0 = arith.constant 0 : i32
    %c0_i32_1 = arith.constant 0 : i32
    return %c0_i32, %c0_i32_0 : i32, i32
  }
  func.func @transform_3(%arg0: i32, %arg1: i32) -> (i32, i32) {
    %c0_i32 = arith.constant 0 : i32
    %c0_i32_0 = arith.constant 0 : i32
    %c0_i32_1 = arith.constant 0 : i32
    return %c0_i32, %c0_i32_0 : i32, i32
  }
  func.func @transform_4(%arg0: i32, %arg1: i32) -> (i32, i32) {
    %c0_i32 = arith.constant 0 : i32
    %c0_i32_0 = arith.constant 0 : i32
    %c0_i32_1 = arith.constant 0 : i32
    return %c0_i32, %c0_i32_0 : i32, i32
  }
  func.func @transform_5(%arg0: i32, %arg1: i32) -> (i32, i32) {
    %c0_i32 = arith.constant 0 : i32
    %c0_i32_0 = arith.constant 0 : i32
    %c0_i32_1 = arith.constant 0 : i32
    return %c0_i32, %c0_i32_0 : i32, i32
  }
  func.func @transform_6(%arg0: i32, %arg1: i32) -> (i32, i32) {
    %c0_i32 = arith.constant 0 : i32
    %c0_i32_0 = arith.constant 0 : i32
    return %c0_i32, %arg1 : i32, i32
  }
  func.func @transform_7(%arg0: i32, %arg1: i32) -> (i32, i32) {
    %c0_i32 = arith.constant 0 : i32
    %c0_i32_0 = arith.constant 0 : i32
    return %c0_i32, %arg1 : i32, i32
  }
  func.func @transform_8(%arg0: i32, %arg1: i32) -> (i32, i32) {
    %c0_i32 = arith.constant 0 : i32
    %c0_i32_0 = arith.constant 0 : i32
    return %arg1, %c0_i32 : i32, i32
  }
  func.func @transform_9(%arg0: i32, %arg1: i32) -> (i32, i32) {
    %c0_i32 = arith.constant 0 : i32
    %c0_i32_0 = arith.constant 0 : i32
    %c0_i32_1 = arith.constant 0 : i32
    return %c0_i32, %c0_i32_0 : i32, i32
  }
  func.func @transform_10(%arg0: i32, %arg1: i32) -> (i32, i32) {
    %c0_i32 = arith.constant 0 : i32
    %c0_i32_0 = arith.constant 0 : i32
    %c0_i32_1 = arith.constant 0 : i32
    return %c0_i32, %c0_i32_0 : i32, i32
  }
  func.func @transform_11(%arg0: i32, %arg1: i32) -> (i32, i32) {
    %c0_i32 = arith.constant 0 : i32
    %c0_i32_0 = arith.constant 0 : i32
    %c0_i32_1 = arith.constant 0 : i32
    return %c0_i32, %c0_i32_0 : i32, i32
  }
  func.func @transform_12(%arg0: i32, %arg1: i32) -> (i32, i32) {
    %c0_i32 = arith.constant 0 : i32
    %c0_i32_0 = arith.constant 0 : i32
    return %arg0, %c0_i32 : i32, i32
  }
}

module attributes {stable_mosaic.version = 11 : i64} {
  func.func @_moe_attn_kernel(%arg0: i32, %arg1: i32, %arg2: memref<1x8x32xf32, #tpu.memory_space<vmem>>, %arg3: memref<1x32x96xbf16, #tpu.memory_space<vmem>>, %arg4: memref<1x1x96xf32, #tpu.memory_space<vmem>>, %arg5: memref<1x32x32xbf16, #tpu.memory_space<vmem>>, %arg6: memref<1x1x32xf32, #tpu.memory_space<vmem>>, %arg7: memref<32x4xf32, #tpu.memory_space<vmem>>, %arg8: memref<1x4xf32, #tpu.memory_space<vmem>>, %arg9: memref<1x8x32xf32, #tpu.memory_space<vmem>>, %arg10: memref<8x32xf32, #tpu.memory_space<vmem>>, %arg11: memref<8x4xf32, #tpu.memory_space<vmem>>) attributes {dimension_semantics = [#tpu.dimension_semantics<parallel>, #tpu.dimension_semantics<arbitrary>], iteration_bounds = array<i64: 2, 4>, scalar_prefetch = 0 : i64, scratch_operands = 2 : i64, tpu.core_type = #tpu.core_type<tc>, window_params = [{transform_indices = @transform_0, window_bounds = array<i64: 1, 8, 32>}, {transform_indices = @transform_1, window_bounds = array<i64: 1, 32, 96>}, {transform_indices = @transform_2, window_bounds = array<i64: 1, 1, 96>}, {transform_indices = @transform_3, window_bounds = array<i64: 1, 32, 32>}, {transform_indices = @transform_4, window_bounds = array<i64: 1, 1, 32>}, {pipeline_mode = #tpu.pipeline_mode<synchronous>, transform_indices = @transform_5, window_bounds = array<i64: 32, 4>}, {pipeline_mode = #tpu.pipeline_mode<synchronous>, transform_indices = @transform_6, window_bounds = array<i64: 1, 4>}, {transform_indices = @transform_7, window_bounds = array<i64: 1, 8, 32>}]} {
    %c0 = arith.constant 0 : index
    %c0_0 = arith.constant 0 : index
    %c0_1 = arith.constant 0 : index
    %0 = vector.load %arg2[%c0, %c0_0, %c0_1] : memref<1x8x32xf32, #tpu.memory_space<vmem>>, vector<1x8x32xf32>
    %1 = vector.shape_cast %0 : vector<1x8x32xf32> to vector<8x32xf32>
    %c0_i32 = arith.constant 0 : i32
    %2 = arith.cmpi eq, %arg1, %c0_i32 : i32
    %3 = arith.extui %2 : i1 to i32
    %c0_i32_2 = arith.constant 0 : i32
    %4 = arith.cmpi ne, %3, %c0_i32_2 : i32
    scf.if %4 {
      %c0_65 = arith.constant 0 : index
      %c0_66 = arith.constant 0 : index
      %194 = vector.load %arg7[%c0_65, %c0_66] : memref<32x4xf32, #tpu.memory_space<vmem>>, vector<32x4xf32>
      %cst_67 = arith.constant dense<0.000000e+00> : vector<8x4xf32>
      %195 = tpu.matmul %1, %194, %cst_67 {dimension_numbers = #tpu.dot_dimension_numbers<[1], [0], [0], [1], [0, 0, 1, 1], [], []>} : vector<8x32xf32>, vector<32x4xf32>, vector<8x4xf32> -> vector<8x4xf32>
      %c0_68 = arith.constant 0 : index
      %c0_69 = arith.constant 0 : index
      %196 = vector.load %arg8[%c0_68, %c0_69] : memref<1x4xf32, #tpu.memory_space<vmem>>, vector<1x4xf32>
      %197 = vector.broadcast %196 : vector<1x4xf32> to vector<8x4xf32>
      %198 = arith.addf %195, %197 : vector<8x4xf32>
      %cst_70 = arith.constant dense<0xFF800000> : vector<8xf32>
      %199 = vector.multi_reduction <maximumf>, %198, %cst_70 [1] : vector<8x4xf32> to vector<8xf32>
      %200 = vector.shape_cast %199 : vector<8xf32> to vector<8x1xf32>
      %201 = vector.broadcast %200 : vector<8x1xf32> to vector<8x4xf32>
      %202 = arith.subf %198, %201 : vector<8x4xf32>
      %203 = math.exp %202 : vector<8x4xf32>
      %cst_71 = arith.constant dense<0.000000e+00> : vector<8xf32>
      %204 = vector.multi_reduction <add>, %203, %cst_71 [1] : vector<8x4xf32> to vector<8xf32>
      %205 = vector.shape_cast %204 : vector<8xf32> to vector<8x1xf32>
      %206 = vector.broadcast %205 : vector<8x1xf32> to vector<8x4xf32>
      %207 = arith.divf %203, %206 : vector<8x4xf32>
      %c0_72 = arith.constant 0 : index
      %c0_73 = arith.constant 0 : index
      %208 = vector.load %arg11[%c0_72, %c0_73] : memref<8x4xf32, #tpu.memory_space<vmem>>, vector<8x4xf32>
      tpu.vector_store %arg11[%c0_72, %c0_73], %207 {strides = array<i32>} : memref<8x4xf32, #tpu.memory_space<vmem>>, vector<8x4xf32>,
      %cst_74 = arith.constant 0.000000e+00 : f32
      %209 = vector.broadcast %cst_74 : f32 to vector<8x32xf32>
      %c0_75 = arith.constant 0 : index
      %c0_76 = arith.constant 0 : index
      %210 = vector.load %arg10[%c0_75, %c0_76] : memref<8x32xf32, #tpu.memory_space<vmem>>, vector<8x32xf32>
      tpu.vector_store %arg10[%c0_75, %c0_76], %209 {strides = array<i32>} : memref<8x32xf32, #tpu.memory_space<vmem>>, vector<8x32xf32>,
    } else {
    }
    %5 = arith.truncf %1 : vector<8x32xf32> to vector<8x32xbf16>
    %c0_3 = arith.constant 0 : index
    %c0_4 = arith.constant 0 : index
    %c0_5 = arith.constant 0 : index
    %6 = vector.load %arg3[%c0_3, %c0_4, %c0_5] : memref<1x32x96xbf16, #tpu.memory_space<vmem>>, vector<1x32x96xbf16>
    %7 = vector.shape_cast %6 : vector<1x32x96xbf16> to vector<32x96xbf16>
    %cst = arith.constant dense<0.000000e+00> : vector<8x96xf32>
    %8 = tpu.matmul %5, %7, %cst {dimension_numbers = #tpu.dot_dimension_numbers<[1], [0], [0], [1], [0, 0, 1, 1], [], []>} : vector<8x32xbf16>, vector<32x96xbf16>, vector<8x96xf32> -> vector<8x96xf32>
    %c0_6 = arith.constant 0 : index
    %c0_7 = arith.constant 0 : index
    %c0_8 = arith.constant 0 : index
    %9 = vector.load %arg4[%c0_6, %c0_7, %c0_8] : memref<1x1x96xf32, #tpu.memory_space<vmem>>, vector<1x1x96xf32>
    %10 = vector.shape_cast %9 : vector<1x1x96xf32> to vector<1x96xf32>
    %11 = vector.broadcast %10 : vector<1x96xf32> to vector<8x96xf32>
    %12 = arith.addf %8, %11 : vector<8x96xf32>
    %13 = vector.extract_strided_slice %12 {offsets = [0, 0], sizes = [8, 32], strides = [1, 1]} : vector<8x96xf32> to vector<8x32xf32>
    %14 = vector.extract_strided_slice %12 {offsets = [0, 32], sizes = [8, 32], strides = [1, 1]} : vector<8x96xf32> to vector<8x32xf32>
    %15 = vector.extract_strided_slice %12 {offsets = [0, 64], sizes = [8, 32], strides = [1, 1]} : vector<8x96xf32> to vector<8x32xf32>
    %16 = tpu.iota {dimensions = array<i32: 0>} : vector<8x8xi32>
    %17 = vector.extract_strided_slice %13 {offsets = [0, 0], sizes = [8, 8], strides = [1, 1]} : vector<8x32xf32> to vector<8x8xf32>
    %18 = arith.truncf %17 : vector<8x8xf32> to vector<8x8xbf16>
    %cst_9 = arith.constant -1.000000e+30 : f32
    %19 = vector.broadcast %cst_9 : f32 to vector<8x1xf32>
    %cst_10 = arith.constant 0.000000e+00 : f32
    %20 = vector.broadcast %cst_10 : f32 to vector<8x1xf32>
    %cst_11 = arith.constant 0.000000e+00 : f32
    %21 = vector.broadcast %cst_11 : f32 to vector<8x8xf32>
    %22 = vector.extract_strided_slice %14 {offsets = [0, 0], sizes = [8, 8], strides = [1, 1]} : vector<8x32xf32> to vector<8x8xf32>
    %23 = arith.truncf %22 : vector<8x8xf32> to vector<8x8xbf16>
    %24 = vector.extract_strided_slice %15 {offsets = [0, 0], sizes = [8, 8], strides = [1, 1]} : vector<8x32xf32> to vector<8x8xf32>
    %25 = arith.truncf %24 : vector<8x8xf32> to vector<8x8xbf16>
    %26 = tpu.transpose %23, [1, 0] : vector<8x8xbf16> -> vector<8x8xbf16>
    %cst_12 = arith.constant dense<0.000000e+00> : vector<8x8xf32>
    %27 = tpu.matmul %18, %26, %cst_12 {dimension_numbers = #tpu.dot_dimension_numbers<[1], [0], [0], [1], [0, 0, 1, 1], [], []>} : vector<8x8xbf16>, vector<8x8xbf16>, vector<8x8xf32> -> vector<8x8xf32>
    %cst_13 = arith.constant 0.353553385 : f32
    %28 = vector.broadcast %cst_13 : f32 to vector<8x8xf32>
    %29 = arith.mulf %27, %28 : vector<8x8xf32>
    %30 = tpu.iota {dimensions = array<i32: 1>} : vector<8x8xi32>
    %c0_i32_14 = arith.constant 0 : i32
    %31 = vector.broadcast %c0_i32_14 : i32 to vector<8x8xi32>
    %32 = arith.addi %31, %30 : vector<8x8xi32>
    %33 = arith.cmpi sle, %32, %16 : vector<8x8xi32>
    %cst_15 = arith.constant -1.000000e+30 : f32
    %34 = vector.broadcast %cst_15 : f32 to vector<8x8xf32>
    %35 = arith.select %33, %29, %34 : vector<8x8xi1>, vector<8x8xf32>
    %cst_16 = arith.constant dense<0xFF800000> : vector<8xf32>
    %36 = vector.multi_reduction <maximumf>, %35, %cst_16 [1] : vector<8x8xf32> to vector<8xf32>
    %37 = vector.shape_cast %36 : vector<8xf32> to vector<8x1xf32>
    %38 = arith.maximumf %19, %37 : vector<8x1xf32>
    %39 = arith.subf %19, %38 : vector<8x1xf32>
    %40 = math.exp %39 : vector<8x1xf32>
    %41 = vector.broadcast %38 : vector<8x1xf32> to vector<8x8xf32>
    %42 = arith.subf %35, %41 : vector<8x8xf32>
    %43 = math.exp %42 : vector<8x8xf32>
    %44 = arith.mulf %40, %20 : vector<8x1xf32>
    %cst_17 = arith.constant dense<0.000000e+00> : vector<8xf32>
    %45 = vector.multi_reduction <add>, %43, %cst_17 [1] : vector<8x8xf32> to vector<8xf32>
    %46 = vector.shape_cast %45 : vector<8xf32> to vector<8x1xf32>
    %47 = arith.addf %44, %46 : vector<8x1xf32>
    %48 = vector.broadcast %40 : vector<8x1xf32> to vector<8x8xf32>
    %49 = arith.mulf %48, %21 : vector<8x8xf32>
    %50 = arith.truncf %43 : vector<8x8xf32> to vector<8x8xbf16>
    %cst_18 = arith.constant dense<0.000000e+00> : vector<8x8xf32>
    %51 = tpu.matmul %50, %25, %cst_18 {dimension_numbers = #tpu.dot_dimension_numbers<[1], [0], [0], [1], [0, 0, 1, 1], [], []>} : vector<8x8xbf16>, vector<8x8xbf16>, vector<8x8xf32> -> vector<8x8xf32>
    %52 = arith.addf %49, %51 : vector<8x8xf32>
    %53 = vector.broadcast %47 : vector<8x1xf32> to vector<8x8xf32>
    %54 = arith.divf %52, %53 : vector<8x8xf32>
    %55 = vector.extract_strided_slice %13 {offsets = [0, 8], sizes = [8, 8], strides = [1, 1]} : vector<8x32xf32> to vector<8x8xf32>
    %56 = arith.truncf %55 : vector<8x8xf32> to vector<8x8xbf16>
    %cst_19 = arith.constant -1.000000e+30 : f32
    %57 = vector.broadcast %cst_19 : f32 to vector<8x1xf32>
    %cst_20 = arith.constant 0.000000e+00 : f32
    %58 = vector.broadcast %cst_20 : f32 to vector<8x1xf32>
    %cst_21 = arith.constant 0.000000e+00 : f32
    %59 = vector.broadcast %cst_21 : f32 to vector<8x8xf32>
    %60 = vector.extract_strided_slice %14 {offsets = [0, 8], sizes = [8, 8], strides = [1, 1]} : vector<8x32xf32> to vector<8x8xf32>
    %61 = arith.truncf %60 : vector<8x8xf32> to vector<8x8xbf16>
    %62 = vector.extract_strided_slice %15 {offsets = [0, 8], sizes = [8, 8], strides = [1, 1]} : vector<8x32xf32> to vector<8x8xf32>
    %63 = arith.truncf %62 : vector<8x8xf32> to vector<8x8xbf16>
    %64 = tpu.transpose %61, [1, 0] : vector<8x8xbf16> -> vector<8x8xbf16>
    %cst_22 = arith.constant dense<0.000000e+00> : vector<8x8xf32>
    %65 = tpu.matmul %56, %64, %cst_22 {dimension_numbers = #tpu.dot_dimension_numbers<[1], [0], [0], [1], [0, 0, 1, 1], [], []>} : vector<8x8xbf16>, vector<8x8xbf16>, vector<8x8xf32> -> vector<8x8xf32>
    %cst_23 = arith.constant 0.353553385 : f32
    %66 = vector.broadcast %cst_23 : f32 to vector<8x8xf32>
    %67 = arith.mulf %65, %66 : vector<8x8xf32>
    %68 = tpu.iota {dimensions = array<i32: 1>} : vector<8x8xi32>
    %c0_i32_24 = arith.constant 0 : i32
    %69 = vector.broadcast %c0_i32_24 : i32 to vector<8x8xi32>
    %70 = arith.addi %69, %68 : vector<8x8xi32>
    %71 = arith.cmpi sle, %70, %16 : vector<8x8xi32>
    %cst_25 = arith.constant -1.000000e+30 : f32
    %72 = vector.broadcast %cst_25 : f32 to vector<8x8xf32>
    %73 = arith.select %71, %67, %72 : vector<8x8xi1>, vector<8x8xf32>
    %cst_26 = arith.constant dense<0xFF800000> : vector<8xf32>
    %74 = vector.multi_reduction <maximumf>, %73, %cst_26 [1] : vector<8x8xf32> to vector<8xf32>
    %75 = vector.shape_cast %74 : vector<8xf32> to vector<8x1xf32>
    %76 = arith.maximumf %57, %75 : vector<8x1xf32>
    %77 = arith.subf %57, %76 : vector<8x1xf32>
    %78 = math.exp %77 : vector<8x1xf32>
    %79 = vector.broadcast %76 : vector<8x1xf32> to vector<8x8xf32>
    %80 = arith.subf %73, %79 : vector<8x8xf32>
    %81 = math.exp %80 : vector<8x8xf32>
    %82 = arith.mulf %78, %58 : vector<8x1xf32>
    %cst_27 = arith.constant dense<0.000000e+00> : vector<8xf32>
    %83 = vector.multi_reduction <add>, %81, %cst_27 [1] : vector<8x8xf32> to vector<8xf32>
    %84 = vector.shape_cast %83 : vector<8xf32> to vector<8x1xf32>
    %85 = arith.addf %82, %84 : vector<8x1xf32>
    %86 = vector.broadcast %78 : vector<8x1xf32> to vector<8x8xf32>
    %87 = arith.mulf %86, %59 : vector<8x8xf32>
    %88 = arith.truncf %81 : vector<8x8xf32> to vector<8x8xbf16>
    %cst_28 = arith.constant dense<0.000000e+00> : vector<8x8xf32>
    %89 = tpu.matmul %88, %63, %cst_28 {dimension_numbers = #tpu.dot_dimension_numbers<[1], [0], [0], [1], [0, 0, 1, 1], [], []>} : vector<8x8xbf16>, vector<8x8xbf16>, vector<8x8xf32> -> vector<8x8xf32>
    %90 = arith.addf %87, %89 : vector<8x8xf32>
    %91 = vector.broadcast %85 : vector<8x1xf32> to vector<8x8xf32>
    %92 = arith.divf %90, %91 : vector<8x8xf32>
    %93 = vector.extract_strided_slice %13 {offsets = [0, 16], sizes = [8, 8], strides = [1, 1]} : vector<8x32xf32> to vector<8x8xf32>
    %94 = arith.truncf %93 : vector<8x8xf32> to vector<8x8xbf16>
    %cst_29 = arith.constant -1.000000e+30 : f32
    %95 = vector.broadcast %cst_29 : f32 to vector<8x1xf32>
    %cst_30 = arith.constant 0.000000e+00 : f32
    %96 = vector.broadcast %cst_30 : f32 to vector<8x1xf32>
    %cst_31 = arith.constant 0.000000e+00 : f32
    %97 = vector.broadcast %cst_31 : f32 to vector<8x8xf32>
    %98 = vector.extract_strided_slice %14 {offsets = [0, 16], sizes = [8, 8], strides = [1, 1]} : vector<8x32xf32> to vector<8x8xf32>
    %99 = arith.truncf %98 : vector<8x8xf32> to vector<8x8xbf16>
    %100 = vector.extract_strided_slice %15 {offsets = [0, 16], sizes = [8, 8], strides = [1, 1]} : vector<8x32xf32> to vector<8x8xf32>
    %101 = arith.truncf %100 : vector<8x8xf32> to vector<8x8xbf16>
    %102 = tpu.transpose %99, [1, 0] : vector<8x8xbf16> -> vector<8x8xbf16>
    %cst_32 = arith.constant dense<0.000000e+00> : vector<8x8xf32>
    %103 = tpu.matmul %94, %102, %cst_32 {dimension_numbers = #tpu.dot_dimension_numbers<[1], [0], [0], [1], [0, 0, 1, 1], [], []>} : vector<8x8xbf16>, vector<8x8xbf16>, vector<8x8xf32> -> vector<8x8xf32>
    %cst_33 = arith.constant 0.353553385 : f32
    %104 = vector.broadcast %cst_33 : f32 to vector<8x8xf32>
    %105 = arith.mulf %103, %104 : vector<8x8xf32>
    %106 = tpu.iota {dimensions = array<i32: 1>} : vector<8x8xi32>
    %c0_i32_34 = arith.constant 0 : i32
    %107 = vector.broadcast %c0_i32_34 : i32 to vector<8x8xi32>
    %108 = arith.addi %107, %106 : vector<8x8xi32>
    %109 = arith.cmpi sle, %108, %16 : vector<8x8xi32>
    %cst_35 = arith.constant -1.000000e+30 : f32
    %110 = vector.broadcast %cst_35 : f32 to vector<8x8xf32>
    %111 = arith.select %109, %105, %110 : vector<8x8xi1>, vector<8x8xf32>
    %cst_36 = arith.constant dense<0xFF800000> : vector<8xf32>
    %112 = vector.multi_reduction <maximumf>, %111, %cst_36 [1] : vector<8x8xf32> to vector<8xf32>
    %113 = vector.shape_cast %112 : vector<8xf32> to vector<8x1xf32>
    %114 = arith.maximumf %95, %113 : vector<8x1xf32>
    %115 = arith.subf %95, %114 : vector<8x1xf32>
    %116 = math.exp %115 : vector<8x1xf32>
    %117 = vector.broadcast %114 : vector<8x1xf32> to vector<8x8xf32>
    %118 = arith.subf %111, %117 : vector<8x8xf32>
    %119 = math.exp %118 : vector<8x8xf32>
    %120 = arith.mulf %116, %96 : vector<8x1xf32>
    %cst_37 = arith.constant dense<0.000000e+00> : vector<8xf32>
    %121 = vector.multi_reduction <add>, %119, %cst_37 [1] : vector<8x8xf32> to vector<8xf32>
    %122 = vector.shape_cast %121 : vector<8xf32> to vector<8x1xf32>
    %123 = arith.addf %120, %122 : vector<8x1xf32>
    %124 = vector.broadcast %116 : vector<8x1xf32> to vector<8x8xf32>
    %125 = arith.mulf %124, %97 : vector<8x8xf32>
    %126 = arith.truncf %119 : vector<8x8xf32> to vector<8x8xbf16>
    %cst_38 = arith.constant dense<0.000000e+00> : vector<8x8xf32>
    %127 = tpu.matmul %126, %101, %cst_38 {dimension_numbers = #tpu.dot_dimension_numbers<[1], [0], [0], [1], [0, 0, 1, 1], [], []>} : vector<8x8xbf16>, vector<8x8xbf16>, vector<8x8xf32> -> vector<8x8xf32>
    %128 = arith.addf %125, %127 : vector<8x8xf32>
    %129 = vector.broadcast %123 : vector<8x1xf32> to vector<8x8xf32>
    %130 = arith.divf %128, %129 : vector<8x8xf32>
    %131 = vector.extract_strided_slice %13 {offsets = [0, 24], sizes = [8, 8], strides = [1, 1]} : vector<8x32xf32> to vector<8x8xf32>
    %132 = arith.truncf %131 : vector<8x8xf32> to vector<8x8xbf16>
    %cst_39 = arith.constant -1.000000e+30 : f32
    %133 = vector.broadcast %cst_39 : f32 to vector<8x1xf32>
    %cst_40 = arith.constant 0.000000e+00 : f32
    %134 = vector.broadcast %cst_40 : f32 to vector<8x1xf32>
    %cst_41 = arith.constant 0.000000e+00 : f32
    %135 = vector.broadcast %cst_41 : f32 to vector<8x8xf32>
    %136 = vector.extract_strided_slice %14 {offsets = [0, 24], sizes = [8, 8], strides = [1, 1]} : vector<8x32xf32> to vector<8x8xf32>
    %137 = arith.truncf %136 : vector<8x8xf32> to vector<8x8xbf16>
    %138 = vector.extract_strided_slice %15 {offsets = [0, 24], sizes = [8, 8], strides = [1, 1]} : vector<8x32xf32> to vector<8x8xf32>
    %139 = arith.truncf %138 : vector<8x8xf32> to vector<8x8xbf16>
    %140 = tpu.transpose %137, [1, 0] : vector<8x8xbf16> -> vector<8x8xbf16>
    %cst_42 = arith.constant dense<0.000000e+00> : vector<8x8xf32>
    %141 = tpu.matmul %132, %140, %cst_42 {dimension_numbers = #tpu.dot_dimension_numbers<[1], [0], [0], [1], [0, 0, 1, 1], [], []>} : vector<8x8xbf16>, vector<8x8xbf16>, vector<8x8xf32> -> vector<8x8xf32>
    %cst_43 = arith.constant 0.353553385 : f32
    %142 = vector.broadcast %cst_43 : f32 to vector<8x8xf32>
    %143 = arith.mulf %141, %142 : vector<8x8xf32>
    %144 = tpu.iota {dimensions = array<i32: 1>} : vector<8x8xi32>
    %c0_i32_44 = arith.constant 0 : i32
    %145 = vector.broadcast %c0_i32_44 : i32 to vector<8x8xi32>
    %146 = arith.addi %145, %144 : vector<8x8xi32>
    %147 = arith.cmpi sle, %146, %16 : vector<8x8xi32>
    %cst_45 = arith.constant -1.000000e+30 : f32
    %148 = vector.broadcast %cst_45 : f32 to vector<8x8xf32>
    %149 = arith.select %147, %143, %148 : vector<8x8xi1>, vector<8x8xf32>
    %cst_46 = arith.constant dense<0xFF800000> : vector<8xf32>
    %150 = vector.multi_reduction <maximumf>, %149, %cst_46 [1] : vector<8x8xf32> to vector<8xf32>
    %151 = vector.shape_cast %150 : vector<8xf32> to vector<8x1xf32>
    %152 = arith.maximumf %133, %151 : vector<8x1xf32>
    %153 = arith.subf %133, %152 : vector<8x1xf32>
    %154 = math.exp %153 : vector<8x1xf32>
    %155 = vector.broadcast %152 : vector<8x1xf32> to vector<8x8xf32>
    %156 = arith.subf %149, %155 : vector<8x8xf32>
    %157 = math.exp %156 : vector<8x8xf32>
    %158 = arith.mulf %154, %134 : vector<8x1xf32>
    %cst_47 = arith.constant dense<0.000000e+00> : vector<8xf32>
    %159 = vector.multi_reduction <add>, %157, %cst_47 [1] : vector<8x8xf32> to vector<8xf32>
    %160 = vector.shape_cast %159 : vector<8xf32> to vector<8x1xf32>
    %161 = arith.addf %158, %160 : vector<8x1xf32>
    %162 = vector.broadcast %154 : vector<8x1xf32> to vector<8x8xf32>
    %163 = arith.mulf %162, %135 : vector<8x8xf32>
    %164 = arith.truncf %157 : vector<8x8xf32> to vector<8x8xbf16>
    %cst_48 = arith.constant dense<0.000000e+00> : vector<8x8xf32>
    %165 = tpu.matmul %164, %139, %cst_48 {dimension_numbers = #tpu.dot_dimension_numbers<[1], [0], [0], [1], [0, 0, 1, 1], [], []>} : vector<8x8xbf16>, vector<8x8xbf16>, vector<8x8xf32> -> vector<8x8xf32>
    %166 = arith.addf %163, %165 : vector<8x8xf32>
    %167 = vector.broadcast %161 : vector<8x1xf32> to vector<8x8xf32>
    %168 = arith.divf %166, %167 : vector<8x8xf32>
    %169 = tpu.concatenate %54, %92, %130, %168 in 1 : vector<8x8xf32>, vector<8x8xf32>, vector<8x8xf32>, vector<8x8xf32> -> vector<8x32xf32>
    %170 = arith.truncf %169 : vector<8x32xf32> to vector<8x32xbf16>
    %c0_49 = arith.constant 0 : index
    %c0_50 = arith.constant 0 : index
    %c0_51 = arith.constant 0 : index
    %171 = vector.load %arg5[%c0_49, %c0_50, %c0_51] : memref<1x32x32xbf16, #tpu.memory_space<vmem>>, vector<1x32x32xbf16>
    %172 = vector.shape_cast %171 : vector<1x32x32xbf16> to vector<32x32xbf16>
    %cst_52 = arith.constant dense<0.000000e+00> : vector<8x32xf32>
    %173 = tpu.matmul %170, %172, %cst_52 {dimension_numbers = #tpu.dot_dimension_numbers<[1], [0], [0], [1], [0, 0, 1, 1], [], []>} : vector<8x32xbf16>, vector<32x32xbf16>, vector<8x32xf32> -> vector<8x32xf32>
    %c0_53 = arith.constant 0 : index
    %c0_54 = arith.constant 0 : index
    %c0_55 = arith.constant 0 : index
    %174 = vector.load %arg6[%c0_53, %c0_54, %c0_55] : memref<1x1x32xf32, #tpu.memory_space<vmem>>, vector<1x1x32xf32>
    %175 = vector.shape_cast %174 : vector<1x1x32xf32> to vector<1x32xf32>
    %176 = vector.broadcast %175 : vector<1x32xf32> to vector<8x32xf32>
    %177 = arith.addf %173, %176 : vector<8x32xf32>
    %c0_56 = arith.constant 0 : index
    %c0_57 = arith.constant 0 : index
    %178 = vector.load %arg11[%c0_56, %c0_57] : memref<8x4xf32, #tpu.memory_space<vmem>>, vector<8x4xf32>
    %179 = tpu.iota {dimensions = array<i32: 1>} : vector<8x4xi32>
    %180 = vector.broadcast %arg1 : i32 to vector<8x4xi32>
    %181 = arith.cmpi eq, %179, %180 : vector<8x4xi32>
    %cst_58 = arith.constant 0.000000e+00 : f32
    %182 = vector.broadcast %cst_58 : f32 to vector<8x4xf32>
    %183 = arith.select %181, %178, %182 : vector<8x4xi1>, vector<8x4xf32>
    %cst_59 = arith.constant dense<0.000000e+00> : vector<8xf32>
    %184 = vector.multi_reduction <add>, %183, %cst_59 [1] : vector<8x4xf32> to vector<8xf32>
    %185 = vector.shape_cast %184 : vector<8xf32> to vector<8x1xf32>
    %c0_60 = arith.constant 0 : index
    %c0_61 = arith.constant 0 : index
    %186 = vector.load %arg10[%c0_60, %c0_61] : memref<8x32xf32, #tpu.memory_space<vmem>>, vector<8x32xf32>
    %187 = vector.broadcast %185 : vector<8x1xf32> to vector<8x32xf32>
    %188 = arith.mulf %187, %177 : vector<8x32xf32>
    %189 = arith.addf %186, %188 : vector<8x32xf32>
    %c0_62 = arith.constant 0 : index
    %c0_63 = arith.constant 0 : index
    %190 = vector.load %arg10[%c0_62, %c0_63] : memref<8x32xf32, #tpu.memory_space<vmem>>, vector<8x32xf32>
    tpu.vector_store %arg10[%c0_62, %c0_63], %189 {strides = array<i32>} : memref<8x32xf32, #tpu.memory_space<vmem>>, vector<8x32xf32>,
    %c3_i32 = arith.constant 3 : i32
    %191 = arith.cmpi eq, %arg1, %c3_i32 : i32
    %192 = arith.extui %191 : i1 to i32
    %c0_i32_64 = arith.constant 0 : i32
    %193 = arith.cmpi ne, %192, %c0_i32_64 : i32
    scf.if %193 {
      %c0_65 = arith.constant 0 : index
      %c0_66 = arith.constant 0 : index
      %194 = vector.load %arg10[%c0_65, %c0_66] : memref<8x32xf32, #tpu.memory_space<vmem>>, vector<8x32xf32>
      %c0_67 = arith.constant 0 : index
      %c0_68 = arith.constant 0 : index
      %c0_69 = arith.constant 0 : index
      %195 = vector.load %arg9[%c0_67, %c0_68, %c0_69] : memref<1x8x32xf32, #tpu.memory_space<vmem>>, vector<1x8x32xf32>
      %196 = vector.shape_cast %195 : vector<1x8x32xf32> to vector<8x32xf32>
      %197 = vector.shape_cast %194 : vector<8x32xf32> to vector<1x8x32xf32>
      tpu.vector_store %arg9[%c0_67, %c0_68, %c0_69], %197 {strides = array<i32>} : memref<1x8x32xf32, #tpu.memory_space<vmem>>, vector<1x8x32xf32>,
    } else {
    }
    return
  }
  func.func @transform_0(%arg0: i32, %arg1: i32) -> (i32, i32, i32) {
    %c0_i32 = arith.constant 0 : i32
    %c0_i32_0 = arith.constant 0 : i32
    %c0_i32_1 = arith.constant 0 : i32
    return %arg0, %c0_i32, %c0_i32_0 : i32, i32, i32
  }
  func.func @transform_1(%arg0: i32, %arg1: i32) -> (i32, i32, i32) {
    %c0_i32 = arith.constant 0 : i32
    %c0_i32_0 = arith.constant 0 : i32
    %c0_i32_1 = arith.constant 0 : i32
    return %arg1, %c0_i32, %c0_i32_0 : i32, i32, i32
  }
  func.func @transform_2(%arg0: i32, %arg1: i32) -> (i32, i32, i32) {
    %c0_i32 = arith.constant 0 : i32
    %c0_i32_0 = arith.constant 0 : i32
    %c0_i32_1 = arith.constant 0 : i32
    return %arg1, %c0_i32, %c0_i32_0 : i32, i32, i32
  }
  func.func @transform_3(%arg0: i32, %arg1: i32) -> (i32, i32, i32) {
    %c0_i32 = arith.constant 0 : i32
    %c0_i32_0 = arith.constant 0 : i32
    %c0_i32_1 = arith.constant 0 : i32
    return %arg1, %c0_i32, %c0_i32_0 : i32, i32, i32
  }
  func.func @transform_4(%arg0: i32, %arg1: i32) -> (i32, i32, i32) {
    %c0_i32 = arith.constant 0 : i32
    %c0_i32_0 = arith.constant 0 : i32
    %c0_i32_1 = arith.constant 0 : i32
    return %arg1, %c0_i32, %c0_i32_0 : i32, i32, i32
  }
  func.func @transform_5(%arg0: i32, %arg1: i32) -> (i32, i32) {
    %c0_i32 = arith.constant 0 : i32
    %c0_i32_0 = arith.constant 0 : i32
    %c0_i32_1 = arith.constant 0 : i32
    return %c0_i32, %c0_i32_0 : i32, i32
  }
  func.func @transform_6(%arg0: i32, %arg1: i32) -> (i32, i32) {
    %c0_i32 = arith.constant 0 : i32
    %c0_i32_0 = arith.constant 0 : i32
    %c0_i32_1 = arith.constant 0 : i32
    return %c0_i32, %c0_i32_0 : i32, i32
  }
  func.func @transform_7(%arg0: i32, %arg1: i32) -> (i32, i32, i32) {
    %c0_i32 = arith.constant 0 : i32
    %c0_i32_0 = arith.constant 0 : i32
    %c0_i32_1 = arith.constant 0 : i32
    return %arg0, %c0_i32, %c0_i32_0 : i32, i32, i32
  }
}

</mosaic_0001>

<llo_original>
// kernel: transformer_lm_forward.9
$region0: #{transformer_lm_forward.9}
  #allocation0 [shape = 'u32[]', space=smem, size = 0x4, offset = 0x4, fixed_abs, tag = 'smem constant byte address 0x4 - core index']
  #allocation1 [shape = 'u32[144,128]{1,0:T(1,128)}', space=vmem, size = 0x12000, scoped, tag = 'internal scratch']
  %s0 = inlined_call_operand.vmem [shape: f32[16,32], index: 0, kind: input, shape index: {}]
  %s1 = inlined_call_operand.vmem [shape: f32[1,32], index: 1, kind: input, shape index: {}]
  %s2 = inlined_call_operand.vmem [shape: f32[1,32], index: 2, kind: input, shape index: {}]
  %s3 = inlined_call_operand.vmem [shape: bf16[32,128], index: 3, kind: input, shape index: {}]
  %s4 = inlined_call_operand.vmem [shape: f32[1,128], index: 4, kind: input, shape index: {}]
  %s5 = inlined_call_operand.vmem [shape: f32[16,128], index: 5, kind: output, shape index: {}]
  %s6 = sld [smem:[#allocation0]]
  $region30: #{transformer_lm_forward.9} parent=0
    _
  %s8 = ssub.s32 1, %s6
  %s9 = scalar_select 0, %s8, %s6
  // Predicated region
  $region2: #{transformer_lm_forward.9} parent=0 // pred_check
    _
  $region3: #{transformer_lm_forward.9} parent=0 // pred_check_branch
    %11 = sbr.rel (0) target = $region5
  $region4: #{transformer_lm_forward.9} parent=0 // pred_region
    _
  $region5: #{transformer_lm_forward.9} parent=0 // pred_fallthru
    _
  // Predicated region
  $region6: #{transformer_lm_forward.9} parent=0 // pred_check
    _
  $region7: #{transformer_lm_forward.9} parent=0 // pred_check_branch
    %13 = sbr.rel (0) target = $region9
  $region8: #{transformer_lm_forward.9} parent=0 // pred_region
    _
  $region9: #{transformer_lm_forward.9} parent=0 // pred_fallthru
    _
  // Predicated region
  $region10: #{transformer_lm_forward.9} parent=0 // pred_check
    _
  $region11: #{transformer_lm_forward.9} parent=0 // pred_check_branch
    %15 = sbr.rel (0) target = $region13
  $region12: #{transformer_lm_forward.9} parent=0 // pred_region
    _
  $region13: #{transformer_lm_forward.9} parent=0 // pred_fallthru
    _
  // Predicated region
  $region14: #{transformer_lm_forward.9} parent=0 // pred_check
    _
  $region15: #{transformer_lm_forward.9} parent=0 // pred_check_branch
    %17 = sbr.rel (0) target = $region17
  $region16: #{transformer_lm_forward.9} parent=0 // pred_region
    _
  $region17: #{transformer_lm_forward.9} parent=0 // pred_fallthru
    _
  // Predicated region
  $region18: #{transformer_lm_forward.9} parent=0 // pred_check
    _
  $region19: #{transformer_lm_forward.9} parent=0 // pred_check_branch
    %19 = sbr.rel (0) target = $region21
  $region20: #{transformer_lm_forward.9} parent=0 // pred_region
    _
  $region21: #{transformer_lm_forward.9} parent=0 // pred_fallthru
    _
  %v21 = vld [vmem:[%s0] sm:$0xff]
  %v22 = vld [vmem:[%s0 + $0x8] sm:$0xff]
  %v23 = vld [vmem:[%s1] sm:$0x1]
  %v24 = vld [vmem:[%s2] sm:$0x1]
  %vm25 = vcmask 261120
  %v26 = vsel %vm25, %v21, 0.0
  %27 = vadd.xlane.f32.xlu0 %v26
  %v28 = vpop.xlane.xlu0 %27
  %v29 = vsel %vm25, %v22, 0.0
  %30 = vadd.xlane.f32.xlu0 %v29
  %v31 = vpop.xlane.xlu0 %30
  %v32 = vrcp.pop 32.0
  %v33 = vmul.f32 %v28, %v32
  %v34 = vmul.f32 %v31, %v32
  %v35 = vsub.f32 %v21, %v33
  %v36 = vsub.f32 %v22, %v34
  %v37 = vmul.f32 %v35, %v35
  %v38 = vmul.f32 %v36, %v36
  %v39 = vsel %vm25, %v37, 0.0
  %40 = vadd.xlane.f32.xlu0 %v39
  %v41 = vpop.xlane.xlu0 %40
  %v42 = vsel %vm25, %v38, 0.0
  %43 = vadd.xlane.f32.xlu0 %v42
  %v44 = vpop.xlane.xlu0 %43
  %v45 = vmul.f32 %v41, %v32
  %v46 = vmul.f32 %v44, %v32
  %v47 = vadd.f32 %v45, 1e-05
  %v48 = vadd.f32 %v46, 1e-05
  %v49 = vrsqrt.pop %v47
  %v50 = vrsqrt.pop %v48
  %v51 = vmul.f32 %v35, %v49
  %v52 = vmul.f32 %v36, %v50
  %v54 = vlaneseq
  %v55 = vshrl.u32 %v54, 7
  %v56 = vsub.s32 0, %v55
  %v57 = vrot.slane %v23, %v56
  %v59 = vmul.f32 %v51, %v57
  %v60 = vmul.f32 %v52, %v57
  %v62 = vlaneseq
  %v63 = vshrl.u32 %v62, 7
  %v64 = vsub.s32 0, %v63
  %v65 = vrot.slane %v24, %v64
  %v67 = vadd.f32 %v59, %v65
  %v68 = vadd.f32 %v60, %v65
  %v69 = vpack.c.bf16 %v68, %v67
  %v70 = vld [vmem:[%s3] sm:$0xf]
  %v71 = vld [vmem:[%s3 + $0x4] sm:$0xf]
  %v72 = vld [vmem:[%s3 + $0x8] sm:$0xf]
  %v73 = vld [vmem:[%s3 + $0xc] sm:$0xf]
  %v74 = vld [vmem:[%s4] sm:$0x1]
  %v76 = vlaneseq
  %v77 = vshrl.u32 %v76, 7
  %v78 = vsub.s32 0, %v77
  %v79 = vrot.slane %v74, %v78
  %v85 = vunpack.c.l.b16 %v70
  %v86 = vunpack.c.l.b16 %v71
  %v87 = vunpack.c.l.b16 %v72
  %v88 = vunpack.c.l.b16 %v73
  %v89 = vpack.c.b16 %v86, %v85
  %v90 = vpack.c.b16 %v88, %v87
  %v94 = vsel %vm25, %v69, 0
  %96 = vmatprep.subr.bf16.mxu0 0
  %97 = vmatpush1.bf16.msra.mxu0 %v89
  %98 = vmatprep.subr.bf16.mxu0 0
  %99 = vmatpush1.bf16.msra.mxu0 %v90
  %100 = vmatprep.subr.bf16.mxu0 0
  %101 = vmatpush1.bf16.msra.mxu0 0
  %102 = vmatprep.subr.bf16.mxu0 0
  %103 = vmatpush1.bf16.msra.mxu0 0
  %104 = vmatprep.subr.bf16.mxu0 0
  %105 = vmatpush1.bf16.msra.mxu0 0
  %106 = vmatprep.subr.bf16.mxu0 0
  %107 = vmatpush1.bf16.msra.mxu0 0
  %108 = vmatprep.subr.bf16.mxu0 0
  %109 = vmatpush1.bf16.msra.mxu0 0
  %110 = vmatprep.subr.bf16.mxu0 0
  %111 = vmatpush1.bf16.msra.mxu0 0
  %112 = vmatprep.subr.bf16.mxu0 0
  %113 = vmatpush1.bf16.msra.mxu0 0
  %114 = vmatprep.subr.bf16.mxu0 0
  %115 = vmatpush1.bf16.msra.mxu0 0
  %116 = vmatprep.subr.bf16.mxu0 0
  %117 = vmatpush1.bf16.msra.mxu0 0
  %118 = vmatprep.subr.bf16.mxu0 0
  %119 = vmatpush1.bf16.msra.mxu0 0
  %120 = vmatprep.subr.bf16.mxu0 0
  %121 = vmatpush1.bf16.msra.mxu0 0
  %122 = vmatprep.subr.bf16.mxu0 0
  %123 = vmatpush1.bf16.msra.mxu0 0
  %124 = vmatprep.subr.bf16.mxu0 0
  %125 = vmatpush1.bf16.msra.mxu0 0
  %126 = vmatprep.subr.bf16.mxu0 0
  %127 = vmatpush1.bf16.msra.mxu0 0
  %128 = vmatprep.mubr.bf16.mxu0 0
  %129 = vmatmul.mubr.bf16.gmra.mrb[0].mxu0 %v94
  %v130 = vpop.f32.mrb[0].mxu0
  %v131 = vadd.f32 %v79, %v130
  %v132 = vpop.f32.mrb[0].mxu0
  %v133 = vpop.f32.mrb[0].mxu0
  %v134 = vadd.f32 %v79, %v133
  %v135 = vpop.f32.mrb[0].mxu0
  %136 = vdwg.mxu0
  %137 = vmax.xlane.f32.xlu0 %v131
  %v138 = vpop.xlane.xlu0 %137
  %139 = vmax.xlane.f32.xlu0 %v134
  %v140 = vpop.xlane.xlu0 %139
  %v141 = vsub.f32 %v131, %v138
  %v142 = vsub.f32 %v134, %v140
  %v143 = vmul.f32 %v141, 1.442695
  %v144 = vpow.pop %v143
  %v145 = vmul.f32 %v142, 1.442695
  %v146 = vpow.pop %v145
  %147 = vadd.xlane.f32.xlu0 %v144
  %v148 = vpop.xlane.xlu0 %147
  %149 = vadd.xlane.f32.xlu0 %v146
  %v150 = vpop.xlane.xlu0 %149
  %v151 = vlog2.pop %v148
  %v152 = vmul.f32 %v151, 0.6931472
  %v153 = vlog2.pop %v150
  %v154 = vmul.f32 %v153, 0.6931472
  %v155 = vsub.f32 %v141, %v152
  %v156 = vsub.f32 %v142, %v154
  %157 = vst [vmem:[%s5] sm:$0xff] %v155
  %158 = vst [vmem:[%s5 + $0x8] sm:$0xff] %v156
  // Predicated region
  $region22: #{transformer_lm_forward.9} parent=0 // pred_check
    _
  $region23: #{transformer_lm_forward.9} parent=0 // pred_check_branch
    %160 = sbr.rel (0) target = $region25
  $region24: #{transformer_lm_forward.9} parent=0 // pred_region
    _
  $region25: #{transformer_lm_forward.9} parent=0 // pred_fallthru
    _
  // Predicated region
  $region26: #{transformer_lm_forward.9} parent=0 // pred_check
    _
  $region27: #{transformer_lm_forward.9} parent=0 // pred_check_branch
    %162 = sbr.rel (0) target = $region29
  $region28: #{transformer_lm_forward.9} parent=0 // pred_region
    _
  $region29: #{transformer_lm_forward.9} parent=0 // pred_fallthru
    _

// kernel: transformer_lm_forward.6
$region0: #{transformer_lm_forward.6}
  #allocation0 [shape = 'u32[]', space=smem, size = 0x4, offset = 0x4, fixed_abs, tag = 'smem constant byte address 0x4 - core index']
  #allocation1 [shape = 'u32[144,128]{1,0:T(1,128)}', space=vmem, size = 0x12000, scoped, tag = 'internal scratch']
  #allocation2 [shape = 'f32[16,32]{1,0:T(8,128)}', space=vmem, size = 0x2000, scoped, tag = 'scratch operand']
  #allocation3 [shape = 'f32[16,32]{1,0:T(8,128)}', space=vmem, size = 0x2000, scoped, tag = 'scratch operand']
  %s0 = inlined_call_operand.vmem [shape: f32[16,32], index: 0, kind: input, shape index: {}]
  %s1 = inlined_call_operand.vmem [shape: f32[16,32], index: 1, kind: input, shape index: {}]
  %s2 = inlined_call_operand.vmem [shape: f32[1,32], index: 2, kind: input, shape index: {}]
  %s3 = inlined_call_operand.vmem [shape: f32[1,32], index: 3, kind: input, shape index: {}]
  %s4 = inlined_call_operand.vmem [shape: f32[1,32], index: 4, kind: input, shape index: {}]
  %s5 = inlined_call_operand.vmem [shape: f32[1,32], index: 5, kind: input, shape index: {}]
  %s6 = inlined_call_operand.vmem [shape: bf16[32,64], index: 6, kind: input, shape index: {}]
  %s7 = inlined_call_operand.vmem [shape: f32[1,64], index: 7, kind: input, shape index: {}]
  %s8 = inlined_call_operand.vmem [shape: bf16[64,32], index: 8, kind: input, shape index: {}]
  %s9 = inlined_call_operand.vmem [shape: f32[1,32], index: 9, kind: input, shape index: {}]
  %s10 = inlined_call_operand.vmem [shape: f32[1,32], index: 10, kind: input, shape index: {}]
  %s11 = inlined_call_operand.vmem [shape: f32[1,32], index: 11, kind: input, shape index: {}]
  %s12 = inlined_call_operand.vmem [shape: f32[16,32], index: 12, kind: output, shape index: {}]
  %s13 = sld [smem:[#allocation0]]
  $region66: #{transformer_lm_forward.6} parent=0
    _
  %s15 = ssub.s32 1, %s13
  %s16 = scalar_select 0, %s15, %s13
  // Predicated region
  $region2: #{transformer_lm_forward.6} parent=0 // pred_check
    _
  $region3: #{transformer_lm_forward.6} parent=0 // pred_check_branch
    %18 = sbr.rel (0) target = $region5
  $region4: #{transformer_lm_forward.6} parent=0 // pred_region
    _
  $region5: #{transformer_lm_forward.6} parent=0 // pred_fallthru
    _
  // Predicated region
  $region6: #{transformer_lm_forward.6} parent=0 // pred_check
    _
  $region7: #{transformer_lm_forward.6} parent=0 // pred_check_branch
    %20 = sbr.rel (0) target = $region9
  $region8: #{transformer_lm_forward.6} parent=0 // pred_region
    _
  $region9: #{transformer_lm_forward.6} parent=0 // pred_fallthru
    _
  // Predicated region
  $region10: #{transformer_lm_forward.6} parent=0 // pred_check
    _
  $region11: #{transformer_lm_forward.6} parent=0 // pred_check_branch
    %22 = sbr.rel (0) target = $region13
  $region12: #{transformer_lm_forward.6} parent=0 // pred_region
    _
  $region13: #{transformer_lm_forward.6} parent=0 // pred_fallthru
    _
  // Predicated region
  $region14: #{transformer_lm_forward.6} parent=0 // pred_check
    _
  $region15: #{transformer_lm_forward.6} parent=0 // pred_check_branch
    %24 = sbr.rel (0) target = $region17
  $region16: #{transformer_lm_forward.6} parent=0 // pred_region
    _
  $region17: #{transformer_lm_forward.6} parent=0 // pred_fallthru
    _
  // Predicated region
  $region18: #{transformer_lm_forward.6} parent=0 // pred_check
    _
  $region19: #{transformer_lm_forward.6} parent=0 // pred_check_branch
    %26 = sbr.rel (0) target = $region21
  $region20: #{transformer_lm_forward.6} parent=0 // pred_region
    _
  $region21: #{transformer_lm_forward.6} parent=0 // pred_fallthru
    _
  // Predicated region
  $region22: #{transformer_lm_forward.6} parent=0 // pred_check
    _
  $region23: #{transformer_lm_forward.6} parent=0 // pred_check_branch
    %28 = sbr.rel (0) target = $region25
  $region24: #{transformer_lm_forward.6} parent=0 // pred_region
    _
  $region25: #{transformer_lm_forward.6} parent=0 // pred_fallthru
    _
  // Predicated region
  $region26: #{transformer_lm_forward.6} parent=0 // pred_check
    _
  $region27: #{transformer_lm_forward.6} parent=0 // pred_check_branch
    %30 = sbr.rel (0) target = $region29
  $region28: #{transformer_lm_forward.6} parent=0 // pred_region
    _
  $region29: #{transformer_lm_forward.6} parent=0 // pred_fallthru
    _
  // Predicated region
  $region30: #{transformer_lm_forward.6} parent=0 // pred_check
    _
  $region31: #{transformer_lm_forward.6} parent=0 // pred_check_branch
    %32 = sbr.rel (0) target = $region33
  $region32: #{transformer_lm_forward.6} parent=0 // pred_region
    _
  $region33: #{transformer_lm_forward.6} parent=0 // pred_fallthru
    _
  // Predicated region
  $region34: #{transformer_lm_forward.6} parent=0 // pred_check
    _
  $region35: #{transformer_lm_forward.6} parent=0 // pred_check_branch
    %34 = sbr.rel (0) target = $region37
  $region36: #{transformer_lm_forward.6} parent=0 // pred_region
    _
  $region37: #{transformer_lm_forward.6} parent=0 // pred_fallthru
    _
  // Predicated region
  $region38: #{transformer_lm_forward.6} parent=0 // pred_check
    _
  $region39: #{transformer_lm_forward.6} parent=0 // pred_check_branch
    %36 = sbr.rel (0) target = $region41
  $region40: #{transformer_lm_forward.6} parent=0 // pred_region
    _
  $region41: #{transformer_lm_forward.6} parent=0 // pred_fallthru
    _
  // Predicated region
  $region42: #{transformer_lm_forward.6} parent=0 // pred_check
    _
  $region43: #{transformer_lm_forward.6} parent=0 // pred_check_branch
    %38 = sbr.rel (0) target = $region45
  $region44: #{transformer_lm_forward.6} parent=0 // pred_region
    _
  $region45: #{transformer_lm_forward.6} parent=0 // pred_fallthru
    _
  // Predicated region
  $region46: #{transformer_lm_forward.6} parent=0 // pred_check
    _
  $region47: #{transformer_lm_forward.6} parent=0 // pred_check_branch
    %40 = sbr.rel (0) target = $region49
  $region48: #{transformer_lm_forward.6} parent=0 // pred_region
    _
  $region49: #{transformer_lm_forward.6} parent=0 // pred_fallthru
    _
  %p42 = scmp.eq.s32.totalorder 0, 0
  // Predicated region
  $region50: #{transformer_lm_forward.6} parent=0 // pred_check
    %p43 = pneg %p42
  $region51: #{transformer_lm_forward.6} parent=0 // pred_check_branch
    %45 = sbr.rel (%p43) target = $region53
  $region52: #{transformer_lm_forward.6} parent=0 // pred_region
    %v46 = vld [vmem:[%s0] sm:$0xff]
    %v47 = vld [vmem:[%s0 + $0x8] sm:$0xff]
    %v48 = vld [vmem:[%s1] sm:$0xff]
    %v49 = vld [vmem:[%s1 + $0x8] sm:$0xff]
    %v50 = vadd.f32 %v46, %v48
    %v51 = vadd.f32 %v47, %v49
    %v52 = vld [vmem:[%s2] sm:$0x1]
    %v53 = vld [vmem:[%s3] sm:$0x1]
    %vm54 = vcmask 261120
    %v55 = vsel %vm54, %v50, 0.0
    %56 = vadd.xlane.f32.xlu0 %v55
    %v57 = vpop.xlane.xlu0 %56
    %v58 = vsel %vm54, %v51, 0.0
    %59 = vadd.xlane.f32.xlu0 %v58
    %v60 = vpop.xlane.xlu0 %59
    %v61 = vrcp.pop 32.0
    %v62 = vmul.f32 %v57, %v61
    %v63 = vmul.f32 %v60, %v61
    %v64 = vsub.f32 %v50, %v62
    %v65 = vsub.f32 %v51, %v63
    %v66 = vmul.f32 %v64, %v64
    %v67 = vmul.f32 %v65, %v65
    %v68 = vsel %vm54, %v66, 0.0
    %69 = vadd.xlane.f32.xlu0 %v68
    %v70 = vpop.xlane.xlu0 %69
    %v71 = vsel %vm54, %v67, 0.0
    %72 = vadd.xlane.f32.xlu0 %v71
    %v73 = vpop.xlane.xlu0 %72
    %v74 = vmul.f32 %v70, %v61
    %v75 = vmul.f32 %v73, %v61
    %v76 = vadd.f32 %v74, 1e-05
    %v77 = vadd.f32 %v75, 1e-05
    %v78 = vrsqrt.pop %v76
    %v79 = vrsqrt.pop %v77
    %v80 = vmul.f32 %v64, %v78
    %v81 = vmul.f32 %v65, %v79
    %v83 = vlaneseq
    %v84 = vshrl.u32 %v83, 7
    %v85 = vsub.s32 0, %v84
    %v86 = vrot.slane %v52, %v85
    %v88 = vmul.f32 %v80, %v86
    %v89 = vmul.f32 %v81, %v86
    %v91 = vlaneseq
    %v92 = vshrl.u32 %v91, 7
    %v93 = vsub.s32 0, %v92
    %v94 = vrot.slane %v53, %v93
    %v96 = vadd.f32 %v88, %v94
    %v97 = vadd.f32 %v89, %v94
    %v98 = vld [vmem:[%s4] sm:$0x1]
    %v99 = vld [vmem:[%s5] sm:$0x1]
    %v100 = vsel %vm54, %v96, 0.0
    %101 = vadd.xlane.f32.xlu0 %v100
    %v102 = vpop.xlane.xlu0 %101
    %v103 = vsel %vm54, %v97, 0.0
    %104 = vadd.xlane.f32.xlu0 %v103
    %v105 = vpop.xlane.xlu0 %104
    %v106 = vmul.f32 %v102, %v61
    %v107 = vmul.f32 %v105, %v61
    %v108 = vsub.f32 %v96, %v106
    %v109 = vsub.f32 %v97, %v107
    %v110 = vmul.f32 %v108, %v108
    %v111 = vmul.f32 %v109, %v109
    %v112 = vsel %vm54, %v110, 0.0
    %113 = vadd.xlane.f32.xlu0 %v112
    %v114 = vpop.xlane.xlu0 %113
    %v115 = vsel %vm54, %v111, 0.0
    %116 = vadd.xlane.f32.xlu0 %v115
    %v117 = vpop.xlane.xlu0 %116
    %v118 = vmul.f32 %v114, %v61
    %v119 = vmul.f32 %v117, %v61
    %v120 = vadd.f32 %v118, 1e-05
    %v121 = vadd.f32 %v119, 1e-05
    %v122 = vrsqrt.pop %v120
    %v123 = vrsqrt.pop %v121
    %v124 = vmul.f32 %v108, %v122
    %v125 = vmul.f32 %v109, %v123
    %v127 = vlaneseq
    %v128 = vshrl.u32 %v127, 7
    %v129 = vsub.s32 0, %v128
    %v130 = vrot.slane %v98, %v129
    %v132 = vmul.f32 %v124, %v130
    %v133 = vmul.f32 %v125, %v130
    %v135 = vlaneseq
    %v136 = vshrl.u32 %v135, 7
    %v137 = vsub.s32 0, %v136
    %v138 = vrot.slane %v99, %v137
    %v140 = vadd.f32 %v132, %v138
    %v141 = vadd.f32 %v133, %v138
    %142 = vst.msk [vmem:[#allocation2] sm:$0xff] %vm54, %v140
    %143 = vst.msk [vmem:[#allocation2 + $0x8] sm:$0xff] %vm54, %v141
    %144 = vst.msk [vmem:[#allocation3] sm:$0xff] %vm54, 0.0
    %145 = vst.msk [vmem:[#allocation3 + $0x8] sm:$0xff] %vm54, 0.0
  $region53: #{transformer_lm_forward.6} parent=0 // pred_fallthru
    _
  %v146 = vld [vmem:[#allocation2] sm:$0xff]
  %v147 = vld [vmem:[#allocation2 + $0x8] sm:$0xff]
  %v148 = vpack.c.bf16 %v147, %v146
  %v149 = vld [vmem:[%s6] sm:$0xf]
  %v150 = vld [vmem:[%s6 + $0x4] sm:$0xf]
  %v151 = vld [vmem:[%s6 + $0x8] sm:$0xf]
  %v152 = vld [vmem:[%s6 + $0xc] sm:$0xf]
  %v153 = vld [vmem:[%s7] sm:$0x1]
  %v155 = vlaneseq
  %v156 = vshrl.u32 %v155, 7
  %v157 = vsub.s32 0, %v156
  %v158 = vrot.slane %v153, %v157
  %v164 = vunpack.c.l.b16 %v149
  %v165 = vunpack.c.l.b16 %v150
  %v166 = vunpack.c.l.b16 %v151
  %v167 = vunpack.c.l.b16 %v152
  %v168 = vpack.c.b16 %v165, %v164
  %v169 = vpack.c.b16 %v167, %v166
  %vm172 = vcmask 261120
  %v174 = vsel %vm172, %v148, 0
  %176 = vmatprep.subr.bf16.mxu0 0
  %177 = vmatpush1.bf16.msra.mxu0 %v168
  %178 = vmatprep.subr.bf16.mxu0 0
  %179 = vmatpush1.bf16.msra.mxu0 %v169
  %180 = vmatprep.subr.bf16.mxu0 0
  %181 = vmatpush1.bf16.msra.mxu0 0
  %182 = vmatprep.subr.bf16.mxu0 0
  %183 = vmatpush1.bf16.msra.mxu0 0
  %184 = vmatprep.subr.bf16.mxu0 0
  %185 = vmatpush1.bf16.msra.mxu0 0
  %186 = vmatprep.subr.bf16.mxu0 0
  %187 = vmatpush1.bf16.msra.mxu0 0
  %188 = vmatprep.subr.bf16.mxu0 0
  %189 = vmatpush1.bf16.msra.mxu0 0
  %190 = vmatprep.subr.bf16.mxu0 0
  %191 = vmatpush1.bf16.msra.mxu0 0
  %192 = vmatprep.subr.bf16.mxu0 0
  %193 = vmatpush1.bf16.msra.mxu0 0
  %194 = vmatprep.subr.bf16.mxu0 0
  %195 = vmatpush1.bf16.msra.mxu0 0
  %196 = vmatprep.subr.bf16.mxu0 0
  %197 = vmatpush1.bf16.msra.mxu0 0
  %198 = vmatprep.subr.bf16.mxu0 0
  %199 = vmatpush1.bf16.msra.mxu0 0
  %200 = vmatprep.subr.bf16.mxu0 0
  %201 = vmatpush1.bf16.msra.mxu0 0
  %202 = vmatprep.subr.bf16.mxu0 0
  %203 = vmatpush1.bf16.msra.mxu0 0
  %204 = vmatprep.subr.bf16.mxu0 0
  %205 = vmatpush1.bf16.msra.mxu0 0
  %206 = vmatprep.subr.bf16.mxu0 0
  %207 = vmatpush1.bf16.msra.mxu0 0
  %208 = vmatprep.mubr.bf16.mxu0 0
  %209 = vmatmul.mubr.bf16.gmra.mrb[0].mxu0 %v174
  %v210 = vpop.f32.mrb[0].mxu0
  %v211 = vadd.f32 %v158, %v210
  %v212 = vpop.f32.mrb[0].mxu0
  %v213 = vpop.f32.mrb[0].mxu0
  %v214 = vadd.f32 %v158, %v213
  %v215 = vpop.f32.mrb[0].mxu0
  %216 = vdwg.mxu0
  %v217 = vmax.f32 %v211, 0.0
  %v218 = vmax.f32 %v214, 0.0
  %v219 = vld [vmem:[#allocation3] sm:$0xff]
  %v220 = vld [vmem:[#allocation3 + $0x8] sm:$0xff]
  %v221 = vpack.c.bf16 %v218, %v217
  %v222 = vld [vmem:[%s8] sm:$0xf]
  %v223 = vld [vmem:[%s8 + $0x4] sm:$0xf]
  %v224 = vld [vmem:[%s8 + $0x8] sm:$0xf]
  %v225 = vld [vmem:[%s8 + $0xc] sm:$0xf]
  %v226 = vld [vmem:[%s8 + $0x10] sm:$0xf]
  %v227 = vld [vmem:[%s8 + $0x14] sm:$0xf]
  %v228 = vld [vmem:[%s8 + $0x18] sm:$0xf]
  %v229 = vld [vmem:[%s8 + $0x1c] sm:$0xf]
  %v238 = vunpack.c.l.b16 %v222
  %v239 = vunpack.c.l.b16 %v223
  %v240 = vunpack.c.l.b16 %v224
  %v241 = vunpack.c.l.b16 %v225
  %v242 = vunpack.c.l.b16 %v226
  %v243 = vunpack.c.l.b16 %v227
  %v244 = vunpack.c.l.b16 %v228
  %v245 = vunpack.c.l.b16 %v229
  %v246 = vpack.c.b16 %v239, %v238
  %v247 = vpack.c.b16 %v241, %v240
  %v248 = vpack.c.b16 %v243, %v242
  %v249 = vpack.c.b16 %v245, %v244
  %vm254 = vcmask 523264
  %v256 = vsel %vm254, %v221, 0
  %258 = vmatprep.subr.bf16.mxu0 0
  %259 = vmatpush1.bf16.msra.mxu0 %v246
  %260 = vmatprep.subr.bf16.mxu0 0
  %261 = vmatpush1.bf16.msra.mxu0 %v247
  %262 = vmatprep.subr.bf16.mxu0 0
  %263 = vmatpush1.bf16.msra.mxu0 %v248
  %264 = vmatprep.subr.bf16.mxu0 0
  %265 = vmatpush1.bf16.msra.mxu0 %v249
  %266 = vmatprep.subr.bf16.mxu0 0
  %267 = vmatpush1.bf16.msra.mxu0 0
  %268 = vmatprep.subr.bf16.mxu0 0
  %269 = vmatpush1.bf16.msra.mxu0 0
  %270 = vmatprep.subr.bf16.mxu0 0
  %271 = vmatpush1.bf16.msra.mxu0 0
  %272 = vmatprep.subr.bf16.mxu0 0
  %273 = vmatpush1.bf16.msra.mxu0 0
  %274 = vmatprep.subr.bf16.mxu0 0
  %275 = vmatpush1.bf16.msra.mxu0 0
  %276 = vmatprep.subr.bf16.mxu0 0
  %277 = vmatpush1.bf16.msra.mxu0 0
  %278 = vmatprep.subr.bf16.mxu0 0
  %279 = vmatpush1.bf16.msra.mxu0 0
  %280 = vmatprep.subr.bf16.mxu0 0
  %281 = vmatpush1.bf16.msra.mxu0 0
  %282 = vmatprep.subr.bf16.mxu0 0
  %283 = vmatpush1.bf16.msra.mxu0 0
  %284 = vmatprep.subr.bf16.mxu0 0
  %285 = vmatpush1.bf16.msra.mxu0 0
  %286 = vmatprep.subr.bf16.mxu0 0
  %287 = vmatpush1.bf16.msra.mxu0 0
  %288 = vmatprep.subr.bf16.mxu0 0
  %289 = vmatpush1.bf16.msra.mxu0 0
  %290 = vmatprep.mubr.bf16.mxu0 0
  %291 = vmatmul.mubr.bf16.gmra.mrb[0].mxu0 %v256
  %v292 = vpop.f32.mrb[0].mxu0
  %v293 = vadd.f32 0.0, %v292
  %v294 = vpop.f32.mrb[0].mxu0
  %v295 = vpop.f32.mrb[0].mxu0
  %v296 = vadd.f32 0.0, %v295
  %v297 = vpop.f32.mrb[0].mxu0
  %298 = vdwg.mxu0
  %v299 = vadd.f32 %v219, %v293
  %v300 = vadd.f32 %v220, %v296
  %301 = vst.msk [vmem:[#allocation3] sm:$0xff] %vm172, %v299
  %302 = vst.msk [vmem:[#allocation3 + $0x8] sm:$0xff] %vm172, %v300
  // Predicated region
  $region54: #{transformer_lm_forward.6} parent=0 // pred_check
    %p303 = pneg %p42
  $region55: #{transformer_lm_forward.6} parent=0 // pred_check_branch
    %305 = sbr.rel (%p303) target = $region57
  $region56: #{transformer_lm_forward.6} parent=0 // pred_region
    %v306 = vld [vmem:[#allocation2] sm:$0xff]
    %v307 = vld [vmem:[#allocation2 + $0x8] sm:$0xff]
    %v308 = vld [vmem:[#allocation3] sm:$0xff]
    %v309 = vld [vmem:[#allocation3 + $0x8] sm:$0xff]
    %v310 = vadd.f32 %v306, %v308
    %v311 = vadd.f32 %v307, %v309
    %v312 = vld [vmem:[%s9] sm:$0x1]
    %v314 = vlaneseq
    %v315 = vshrl.u32 %v314, 7
    %v316 = vsub.s32 0, %v315
    %v317 = vrot.slane %v312, %v316
    %v319 = vadd.f32 %v310, %v317
    %v320 = vadd.f32 %v311, %v317
    %v321 = vld [vmem:[%s10] sm:$0x1]
    %v322 = vld [vmem:[%s11] sm:$0x1]
    %v323 = vsel %vm172, %v319, 0.0
    %324 = vadd.xlane.f32.xlu0 %v323
    %v325 = vpop.xlane.xlu0 %324
    %v326 = vsel %vm172, %v320, 0.0
    %327 = vadd.xlane.f32.xlu0 %v326
    %v328 = vpop.xlane.xlu0 %327
    %v329 = vrcp.pop 32.0
    %v330 = vmul.f32 %v325, %v329
    %v331 = vmul.f32 %v328, %v329
    %v332 = vsub.f32 %v319, %v330
    %v333 = vsub.f32 %v320, %v331
    %v334 = vmul.f32 %v332, %v332
    %v335 = vmul.f32 %v333, %v333
    %v336 = vsel %vm172, %v334, 0.0
    %337 = vadd.xlane.f32.xlu0 %v336
    %v338 = vpop.xlane.xlu0 %337
    %v339 = vsel %vm172, %v335, 0.0
    %340 = vadd.xlane.f32.xlu0 %v339
    %v341 = vpop.xlane.xlu0 %340
    %v342 = vmul.f32 %v338, %v329
    %v343 = vmul.f32 %v341, %v329
    %v344 = vadd.f32 %v342, 1e-05
    %v345 = vadd.f32 %v343, 1e-05
    %v346 = vrsqrt.pop %v344
    %v347 = vrsqrt.pop %v345
    %v348 = vmul.f32 %v332, %v346
    %v349 = vmul.f32 %v333, %v347
    %v351 = vlaneseq
    %v352 = vshrl.u32 %v351, 7
    %v353 = vsub.s32 0, %v352
    %v354 = vrot.slane %v321, %v353
    %v356 = vmul.f32 %v348, %v354
    %v357 = vmul.f32 %v349, %v354
    %v359 = vlaneseq
    %v360 = vshrl.u32 %v359, 7
    %v361 = vsub.s32 0, %v360
    %v362 = vrot.slane %v322, %v361
    %v364 = vadd.f32 %v356, %v362
    %v365 = vadd.f32 %v357, %v362
    %366 = vst.msk [vmem:[%s12] sm:$0xff] %vm172, %v364
    %367 = vst.msk [vmem:[%s12 + $0x8] sm:$0xff] %vm172, %v365
  $region57: #{transformer_lm_forward.6} parent=0 // pred_fallthru
    _
  // Predicated region
  $region58: #{transformer_lm_forward.6} parent=0 // pred_check
    _
  $region59: #{transformer_lm_forward.6} parent=0 // pred_check_branch
    %369 = sbr.rel (0) target = $region61
  $region60: #{transformer_lm_forward.6} parent=0 // pred_region
    _
  $region61: #{transformer_lm_forward.6} parent=0 // pred_fallthru
    _
  // Predicated region
  $region62: #{transformer_lm_forward.6} parent=0 // pred_check
    _
  $region63: #{transformer_lm_forward.6} parent=0 // pred_check_branch
    %371 = sbr.rel (0) target = $region65
  $region64: #{transformer_lm_forward.6} parent=0 // pred_region
    _
  $region65: #{transformer_lm_forward.6} parent=0 // pred_fallthru
    _

// kernel: transformer_lm_forward.5
$region0: #{transformer_lm_forward.5}
  #allocation0 [shape = 'u32[]', space=smem, size = 0x4, offset = 0x4, fixed_abs, tag = 'smem constant byte address 0x4 - core index']
  #allocation1 [shape = 'u32[144,128]{1,0:T(1,128)}', space=vmem, size = 0x12000, scoped, tag = 'internal scratch']
  #allocation2 [shape = 'f32[8,32]{1,0:T(8,128)}', space=vmem, size = 0x1000, scoped, tag = 'scratch operand']
  #allocation3 [shape = 'f32[8,4]{1,0:T(8,128)}', space=vmem, size = 0x1000, scoped, tag = 'scratch operand']
  %s0 = inlined_call_operand.vmem [shape: f32[2,8,32], index: 0, kind: input, shape index: {}]
  %s1 = inlined_call_operand.vmem [shape: bf16[4,32,96], index: 1, kind: input, shape index: {}]
  %s2 = inlined_call_operand.vmem [shape: f32[4,1,96], index: 2, kind: input, shape index: {}]
  %s3 = inlined_call_operand.vmem [shape: bf16[4,32,32], index: 3, kind: input, shape index: {}]
  %s4 = inlined_call_operand.vmem [shape: f32[4,1,32], index: 4, kind: input, shape index: {}]
  %s5 = inlined_call_operand.vmem [shape: f32[32,4], index: 5, kind: input, shape index: {}]
  %s6 = inlined_call_operand.vmem [shape: f32[1,4], index: 6, kind: input, shape index: {}]
  %s7 = inlined_call_operand.vmem [shape: f32[2,8,32], index: 7, kind: output, shape index: {}]
  %s8 = sld [smem:[#allocation0]]
  $region69: #{transformer_lm_forward.5} parent=0
    _
  %s10 = ssub.s32 1, %s8
  %s11 = scalar_select 0, %s10, %s8
  loop: start=0, step=1, limit=10
  $region2: #{transformer_lm_forward.5} parent=0 // loop_pre_header
    _
  $region3: #{transformer_lm_forward.5} parent=0 // loop_header
    %s13 = sphi 0, %s17
    %p14 = scmp.ge.s32.totalorder %s13, 10
    %s20 = sphi 0, %s32
    %s21 = sphi 0, %s28
    %s22 = sphi 0, %s20
    %s23 = sphi 0, %s21
    %s24 = sphi 0, %s22
    %s25 = sphi 0, %s23
    %s35 = sphi 0, %s37
    %s38 = sphi 0, %s35
    %s39 = sphi 0, %s38
    %s55 = sphi 0, %s39
    %s61 = sphi 0, %s63
    %s64 = sphi 0, %s61
    %s65 = sphi 0, %s64
    %s81 = sphi 0, %s65
    %s87 = sphi 0, %s89
    %s90 = sphi 0, %s87
    %s91 = sphi 0, %s90
    %s107 = sphi 0, %s91
    %s113 = sphi 0, %s115
    %s116 = sphi 0, %s113
    %s117 = sphi 0, %s116
    %s133 = sphi 0, %s117
    %s139 = sphi 0, %s141
    %s142 = sphi 0, %s139
    %s143 = sphi 0, %s142
    %s159 = sphi 0, %s143
    %s163 = sphi 0, %s163
    %s165 = sphi 0, %s163
    %s166 = sphi 0, %s165
    %s180 = sphi 0, %s166
    %s184 = sphi 0, %s184
    %s186 = sphi 0, %s184
    %s187 = sphi 0, %s186
    %s201 = sphi 0, %s187
    %s207 = sphi 0, %s209
    %s210 = sphi 0, %s207
    %s211 = sphi 0, %s210
    %s227 = sphi 0, %s211
  $region4: #{transformer_lm_forward.5} parent=0 // loop_header_branch
    %16 = sbr.rel (%p14) target = $region8
  $region5: #{transformer_lm_forward.5} parent=0 // loop_body
    %s18 = ssub.s32 %s13, 1
    %s19 = ssub.s32 %s13, 2
    %s26 = sadd.s32 1, %s21
    %p27 = scmp.ge.s32.totalorder %s26, 4
    %s28 = scalar_select %p27, 0, %s26
    %s29 = sadd.s32 1, %s20
    %s30 = scalar_select %p27, %s29, %s20
    %p31 = scmp.ge.s32.totalorder %s30, 2
    %s32 = scalar_select %p31, 0, %s30
    %s33 = ssub.s32 %s20, %s32
    %p34 = scmp.eq.s32.totalorder %s33, 0
    %s36 = sadd.s32 %s35, 1
    %s37 = scalar_select %p34, %s35, %s36
    %p40 = pneg %p34
    %p41 = scmp.eq.s32.totalorder %s13, 7
    %p42 = por %p40, %p41
    %p43 = scmp.ne.s32.totalorder %s35, %s38
    %p44 = scmp.eq.s32.totalorder %s13, 0
    %p45 = por %p43, %p44
    %p46 = scmp.ne.s32.totalorder %s35, %s38
    %p47 = scmp.eq.s32.totalorder %s18, 7
    %p48 = por %p46, %p47
    %p49 = scmp.ne.s32.totalorder %s38, %s39
    %p50 = scmp.eq.s32.totalorder %s18, 0
    %p51 = por %p49, %p50
    %p52 = scmp.ne.s32.totalorder %s38, %s39
    %p53 = scmp.eq.s32.totalorder %s19, 7
    %p54 = por %p52, %p53
    %p56 = scmp.ne.s32.totalorder %s39, %s55
    %p57 = scmp.eq.s32.totalorder %s19, 0
    %p58 = por %p56, %p57
    %s59 = ssub.s32 %s21, %s28
    %p60 = scmp.eq.s32.totalorder %s59, 0
    %s62 = sadd.s32 %s61, 1
    %s63 = scalar_select %p60, %s61, %s62
    %p66 = pneg %p60
    %p67 = scmp.eq.s32.totalorder %s13, 7
    %p68 = por %p66, %p67
    %p69 = scmp.ne.s32.totalorder %s61, %s64
    %p70 = scmp.eq.s32.totalorder %s13, 0
    %p71 = por %p69, %p70
    %p72 = scmp.ne.s32.totalorder %s61, %s64
    %p73 = scmp.eq.s32.totalorder %s18, 7
    %p74 = por %p72, %p73
    %p75 = scmp.ne.s32.totalorder %s64, %s65
    %p76 = scmp.eq.s32.totalorder %s18, 0
    %p77 = por %p75, %p76
    %p78 = scmp.ne.s32.totalorder %s64, %s65
    %p79 = scmp.eq.s32.totalorder %s19, 7
    %p80 = por %p78, %p79
    %p82 = scmp.ne.s32.totalorder %s65, %s81
    %p83 = scmp.eq.s32.totalorder %s19, 0
    %p84 = por %p82, %p83
    %s85 = ssub.s32 %s21, %s28
    %p86 = scmp.eq.s32.totalorder %s85, 0
    %s88 = sadd.s32 %s87, 1
    %s89 = scalar_select %p86, %s87, %s88
    %p92 = pneg %p86
    %p93 = scmp.eq.s32.totalorder %s13, 7
    %p94 = por %p92, %p93
    %p95 = scmp.ne.s32.totalorder %s87, %s90
    %p96 = scmp.eq.s32.totalorder %s13, 0
    %p97 = por %p95, %p96
    %p98 = scmp.ne.s32.totalorder %s87, %s90
    %p99 = scmp.eq.s32.totalorder %s18, 7
    %p100 = por %p98, %p99
    %p101 = scmp.ne.s32.totalorder %s90, %s91
    %p102 = scmp.eq.s32.totalorder %s18, 0
    %p103 = por %p101, %p102
    %p104 = scmp.ne.s32.totalorder %s90, %s91
    %p105 = scmp.eq.s32.totalorder %s19, 7
    %p106 = por %p104, %p105
    %p108 = scmp.ne.s32.totalorder %s91, %s107
    %p109 = scmp.eq.s32.totalorder %s19, 0
    %p110 = por %p108, %p109
    %s111 = ssub.s32 %s21, %s28
    %p112 = scmp.eq.s32.totalorder %s111, 0
    %s114 = sadd.s32 %s113, 1
    %s115 = scalar_select %p112, %s113, %s114
    %p118 = pneg %p112
    %p119 = scmp.eq.s32.totalorder %s13, 7
    %p120 = por %p118, %p119
    %p121 = scmp.ne.s32.totalorder %s113, %s116
    %p122 = scmp.eq.s32.totalorder %s13, 0
    %p123 = por %p121, %p122
    %p124 = scmp.ne.s32.totalorder %s113, %s116
    %p125 = scmp.eq.s32.totalorder %s18, 7
    %p126 = por %p124, %p125
    %p127 = scmp.ne.s32.totalorder %s116, %s117
    %p128 = scmp.eq.s32.totalorder %s18, 0
    %p129 = por %p127, %p128
    %p130 = scmp.ne.s32.totalorder %s116, %s117
    %p131 = scmp.eq.s32.totalorder %s19, 7
    %p132 = por %p130, %p131
    %p134 = scmp.ne.s32.totalorder %s117, %s133
    %p135 = scmp.eq.s32.totalorder %s19, 0
    %p136 = por %p134, %p135
    %s137 = ssub.s32 %s21, %s28
    %p138 = scmp.eq.s32.totalorder %s137, 0
    %s140 = sadd.s32 %s139, 1
    %s141 = scalar_select %p138, %s139, %s140
    %p144 = pneg %p138
    %p145 = scmp.eq.s32.totalorder %s13, 7
    %p146 = por %p144, %p145
    %p147 = scmp.ne.s32.totalorder %s139, %s142
    %p148 = scmp.eq.s32.totalorder %s13, 0
    %p149 = por %p147, %p148
    %p150 = scmp.ne.s32.totalorder %s139, %s142
    %p151 = scmp.eq.s32.totalorder %s18, 7
    %p152 = por %p150, %p151
    %p153 = scmp.ne.s32.totalorder %s142, %s143
    %p154 = scmp.eq.s32.totalorder %s18, 0
    %p155 = por %p153, %p154
    %p156 = scmp.ne.s32.totalorder %s142, %s143
    %p157 = scmp.eq.s32.totalorder %s19, 7
    %p158 = por %p156, %p157
    %p160 = scmp.ne.s32.totalorder %s143, %s159
    %p161 = scmp.eq.s32.totalorder %s19, 0
    %p162 = por %p160, %p161
    %s164 = sadd.s32 %s163, 1
    %p167 = scmp.eq.s32.totalorder %s13, 7
    %p168 = scmp.ne.s32.totalorder %s163, %s165
    %p169 = scmp.eq.s32.totalorder %s13, 0
    %p170 = por %p168, %p169
    %p171 = scmp.ne.s32.totalorder %s163, %s165
    %p172 = scmp.eq.s32.totalorder %s18, 7
    %p173 = por %p171, %p172
    %p174 = scmp.ne.s32.totalorder %s165, %s166
    %p175 = scmp.eq.s32.totalorder %s18, 0
    %p176 = por %p174, %p175
    %p177 = scmp.ne.s32.totalorder %s165, %s166
    %p178 = scmp.eq.s32.totalorder %s19, 7
    %p179 = por %p177, %p178
    %p181 = scmp.ne.s32.totalorder %s166, %s180
    %p182 = scmp.eq.s32.totalorder %s19, 0
    %p183 = por %p181, %p182
    %s185 = sadd.s32 %s184, 1
    %p188 = scmp.eq.s32.totalorder %s13, 7
    %p189 = scmp.ne.s32.totalorder %s184, %s186
    %p190 = scmp.eq.s32.totalorder %s13, 0
    %p191 = por %p189, %p190
    %p192 = scmp.ne.s32.totalorder %s184, %s186
    %p193 = scmp.eq.s32.totalorder %s18, 7
    %p194 = por %p192, %p193
    %p195 = scmp.ne.s32.totalorder %s186, %s187
    %p196 = scmp.eq.s32.totalorder %s18, 0
    %p197 = por %p195, %p196
    %p198 = scmp.ne.s32.totalorder %s186, %s187
    %p199 = scmp.eq.s32.totalorder %s19, 7
    %p200 = por %p198, %p199
    %p202 = scmp.ne.s32.totalorder %s187, %s201
    %p203 = scmp.eq.s32.totalorder %s19, 0
    %p204 = por %p202, %p203
    %s205 = ssub.s32 %s20, %s32
    %p206 = scmp.eq.s32.totalorder %s205, 0
    %s208 = sadd.s32 %s207, 1
    %s209 = scalar_select %p206, %s207, %s208
    %p212 = pneg %p206
    %p213 = scmp.eq.s32.totalorder %s13, 7
    %p214 = por %p212, %p213
    %p215 = scmp.ne.s32.totalorder %s207, %s210
    %p216 = scmp.eq.s32.totalorder %s13, 0
    %p217 = por %p215, %p216
    %p218 = scmp.ne.s32.totalorder %s207, %s210
    %p219 = scmp.eq.s32.totalorder %s18, 7
    %p220 = por %p218, %p219
    %p221 = scmp.ne.s32.totalorder %s210, %s211
    %p222 = scmp.eq.s32.totalorder %s18, 0
    %p223 = por %p221, %p222
    %p224 = scmp.ne.s32.totalorder %s210, %s211
    %p225 = scmp.eq.s32.totalorder %s19, 7
    %p226 = por %p224, %p225
    %p228 = scmp.ne.s32.totalorder %s211, %s227
    %p229 = scmp.eq.s32.totalorder %s19, 0
    %p230 = por %p228, %p229
    %p231 = scmp.le.s32.totalorder 1, %s13
    %p232 = scmp.lt.s32.totalorder %s13, 9
    %p233 = pnand %p231, %p232
    %p234 = pneg %p233
    // Predicated region
    $region9: #{transformer_lm_forward.5} parent=5 // pred_check
      _
    $region10: #{transformer_lm_forward.5} parent=5 // pred_check_branch
      %236 = sbr.rel (%p233) target = $region12
    $region11: #{transformer_lm_forward.5} parent=5 // pred_region
      %s237 = ssub.s32 %s13, 1
      // Predicated region
      $region13: #{transformer_lm_forward.5} parent=11 // pred_check
        %p238 = pneg %p176
      $region14: #{transformer_lm_forward.5} parent=11 // pred_check_branch
        %240 = sbr.rel (%p238) target = $region16
      $region15: #{transformer_lm_forward.5} parent=11 // pred_region
        _
      $region16: #{transformer_lm_forward.5} parent=11 // pred_fallthru
        _
      // Predicated region
      $region17: #{transformer_lm_forward.5} parent=11 // pred_check
        %p241 = pneg %p197
      $region18: #{transformer_lm_forward.5} parent=11 // pred_check_branch
        %243 = sbr.rel (%p241) target = $region20
      $region19: #{transformer_lm_forward.5} parent=11 // pred_region
        _
      $region20: #{transformer_lm_forward.5} parent=11 // pred_fallthru
        _
    $region12: #{transformer_lm_forward.5} parent=5 // pred_fallthru
      _
    %p244 = scmp.lt.s32.totalorder %s13, 8
    // Predicated region
    $region21: #{transformer_lm_forward.5} parent=5 // pred_check
      %p245 = pneg %p244
    $region22: #{transformer_lm_forward.5} parent=5 // pred_check_branch
      %247 = sbr.rel (%p245) target = $region24
    $region23: #{transformer_lm_forward.5} parent=5 // pred_region
      // Predicated region
      $region25: #{transformer_lm_forward.5} parent=23 // pred_check
        %p248 = pneg %p45
      $region26: #{transformer_lm_forward.5} parent=23 // pred_check_branch
        %250 = sbr.rel (%p248) target = $region28
      $region27: #{transformer_lm_forward.5} parent=23 // pred_region
        %p251 = scmp.lt.s32.totalorder %s20, 1
        %s252 = scalar_select %p251, %s20, 1
        %s253 = smul.addr %s252, 8
        %s254 = scalar_lea.vmem %s0, %s253
      $region28: #{transformer_lm_forward.5} parent=23 // pred_fallthru
        _
      // Predicated region
      $region29: #{transformer_lm_forward.5} parent=23 // pred_check
        %p255 = pneg %p71
      $region30: #{transformer_lm_forward.5} parent=23 // pred_check_branch
        %257 = sbr.rel (%p255) target = $region32
      $region31: #{transformer_lm_forward.5} parent=23 // pred_region
        %p258 = scmp.lt.s32.totalorder %s21, 3
        %s259 = scalar_select %p258, %s21, 3
        %s260 = smul.addr %s259, 4
        %s261 = smul.addr %s260, 4
        %s262 = scalar_lea.vmem %s1, %s261
      $region32: #{transformer_lm_forward.5} parent=23 // pred_fallthru
        _
      // Predicated region
      $region33: #{transformer_lm_forward.5} parent=23 // pred_check
        %p263 = pneg %p97
      $region34: #{transformer_lm_forward.5} parent=23 // pred_check_branch
        %265 = sbr.rel (%p263) target = $region36
      $region35: #{transformer_lm_forward.5} parent=23 // pred_region
        %p266 = scmp.lt.s32.totalorder %s21, 3
        %s267 = scalar_select %p266, %s21, 3
        %s268 = scalar_lea.vmem %s2, %s267
      $region36: #{transformer_lm_forward.5} parent=23 // pred_fallthru
        _
      // Predicated region
      $region37: #{transformer_lm_forward.5} parent=23 // pred_check
        %p269 = pneg %p123
      $region38: #{transformer_lm_forward.5} parent=23 // pred_check_branch
        %271 = sbr.rel (%p269) target = $region40
      $region39: #{transformer_lm_forward.5} parent=23 // pred_region
        %p272 = scmp.lt.s32.totalorder %s21, 3
        %s273 = scalar_select %p272, %s21, 3
        %s274 = smul.addr %s273, 4
        %s275 = smul.addr %s274, 4
        %s276 = scalar_lea.vmem %s3, %s275
      $region40: #{transformer_lm_forward.5} parent=23 // pred_fallthru
        _
      // Predicated region
      $region41: #{transformer_lm_forward.5} parent=23 // pred_check
        %p277 = pneg %p149
      $region42: #{transformer_lm_forward.5} parent=23 // pred_check_branch
        %279 = sbr.rel (%p277) target = $region44
      $region43: #{transformer_lm_forward.5} parent=23 // pred_region
        %p280 = scmp.lt.s32.totalorder %s21, 3
        %s281 = scalar_select %p280, %s21, 3
        %s282 = scalar_lea.vmem %s4, %s281
      $region44: #{transformer_lm_forward.5} parent=23 // pred_fallthru
        _
    $region24: #{transformer_lm_forward.5} parent=5 // pred_fallthru
      _
    %p283 = scmp.le.s32.totalorder 1, %s13
    %p284 = scmp.lt.s32.totalorder %s13, 9
    %p285 = pnand %p283, %p284
    %p286 = pneg %p285
    // Predicated region
    $region45: #{transformer_lm_forward.5} parent=5 // pred_check
      _
    $region46: #{transformer_lm_forward.5} parent=5 // pred_check_branch
      %288 = sbr.rel (%p285) target = $region48
    $region47: #{transformer_lm_forward.5} parent=5 // pred_region
      %s289 = ssub.s32 %s13, 1
      %p290 = scmp.lt.s32.totalorder %s22, 1
      %s291 = scalar_select %p290, %s22, 1
      %s292 = smul.addr %s291, 8
      %s293 = scalar_lea.vmem %s0, %s292
      %p294 = pneg %p51
      %p295 = pneg %p48
      %p296 = scmp.lt.s32.totalorder %s23, 3
      %s297 = scalar_select %p296, %s23, 3
      %s298 = smul.addr %s297, 4
      %s299 = smul.addr %s298, 4
      %s300 = scalar_lea.vmem %s1, %s299
      %p301 = pneg %p77
      %p302 = pneg %p74
      %p303 = scmp.lt.s32.totalorder %s23, 3
      %s304 = scalar_select %p303, %s23, 3
      %s305 = scalar_lea.vmem %s2, %s304
      %p306 = pneg %p103
      %p307 = pneg %p100
      %p308 = scmp.lt.s32.totalorder %s23, 3
      %s309 = scalar_select %p308, %s23, 3
      %s310 = smul.addr %s309, 4
      %s311 = smul.addr %s310, 4
      %s312 = scalar_lea.vmem %s3, %s311
      %p313 = pneg %p129
      %p314 = pneg %p126
      %p315 = scmp.lt.s32.totalorder %s23, 3
      %s316 = scalar_select %p315, %s23, 3
      %s317 = scalar_lea.vmem %s4, %s316
      %p318 = pneg %p155
      %p319 = pneg %p152
      %p320 = pneg %p176
      %p321 = pneg %p173
      %p322 = pneg %p197
      %p323 = pneg %p194
      %p324 = pneg %p223
      %p325 = pneg %p220
      %p326 = scmp.lt.s32.totalorder %s22, 1
      %s327 = scalar_select %p326, %s22, 1
      %s328 = smul.addr %s327, 8
      %s329 = scalar_lea.vmem %s7, %s328
      %p330 = scmp.lt.s32.totalorder %s22, 1
      %s331 = scalar_select %p330, %s22, 1
      %s332 = smul.addr %s331, 8
      %s333 = scalar_lea.vmem %s0, %s332
      %p334 = scmp.lt.s32.totalorder %s23, 3
      %s335 = scalar_select %p334, %s23, 3
      %s336 = smul.addr %s335, 4
      %s337 = smul.addr %s336, 4
      %s338 = scalar_lea.vmem %s1, %s337
      %p339 = scmp.lt.s32.totalorder %s23, 3
      %s340 = scalar_select %p339, %s23, 3
      %s341 = scalar_lea.vmem %s2, %s340
      %p342 = scmp.lt.s32.totalorder %s23, 3
      %s343 = scalar_select %p342, %s23, 3
      %s344 = smul.addr %s343, 4
      %s345 = smul.addr %s344, 4
      %s346 = scalar_lea.vmem %s3, %s345
      %p347 = scmp.lt.s32.totalorder %s23, 3
      %s348 = scalar_select %p347, %s23, 3
      %s349 = scalar_lea.vmem %s4, %s348
      %p350 = scmp.lt.s32.totalorder %s22, 1
      %s351 = scalar_select %p350, %s22, 1
      %s352 = smul.addr %s351, 8
      %s353 = scalar_lea.vmem %s7, %s352
      %v355 = vld [vmem:[%s333] sm:$0xff]
      %p356 = scmp.eq.s32.totalorder %s23, 0
      // Predicated region
      $region49: #{transformer_lm_forward.5} parent=47 // pred_check
        %p357 = pneg %p356
      $region50: #{transformer_lm_forward.5} parent=47 // pred_check_branch
        %359 = sbr.rel (%p357) target = $region52
      $region51: #{transformer_lm_forward.5} parent=47 // pred_region
        %v360 = vld [vmem:[%s5] sm:$0xff]
        %v361 = vld [vmem:[%s5 + $0x8] sm:$0xff]
        %v362 = vld [vmem:[%s5 + $0x10] sm:$0xff]
        %v363 = vld [vmem:[%s5 + $0x18] sm:$0xff]
        %v364 = vld [vmem:[%s6] sm:$0x1]
        %v366 = vlaneseq
        %v367 = vshrl.u32 %v366, 7
        %v368 = vsub.s32 0, %v367
        %v369 = vrot.slane %v364, %v368
        %vm371 = vcmask 261120
        %v373 = vsel %vm371, %v355, 0
        %375 = vmatprep.subr.mxu0 0.0
        %376 = vmatpush1.msra.mxu0 %v360
        %377 = vmatprep.subr.mxu0 0.0
        %378 = vmatpush1.msra.mxu0 %v361
        %379 = vmatprep.subr.mxu0 0.0
        %380 = vmatpush1.msra.mxu0 %v362
        %381 = vmatprep.subr.mxu0 0.0
        %382 = vmatpush1.msra.mxu0 %v363
        %383 = vmatprep.subr.mxu0 0.0
        %384 = vmatpush1.msra.mxu0 0.0
        %385 = vmatprep.subr.mxu0 0.0
        %386 = vmatpush1.msra.mxu0 0.0
        %387 = vmatprep.subr.mxu0 0.0
        %388 = vmatpush1.msra.mxu0 0.0
        %389 = vmatprep.subr.mxu0 0.0
        %390 = vmatpush1.msra.mxu0 0.0
        %391 = vmatprep.subr.mxu0 0.0
        %392 = vmatpush1.msra.mxu0 0.0
        %393 = vmatprep.subr.mxu0 0.0
        %394 = vmatpush1.msra.mxu0 0.0
        %395 = vmatprep.subr.mxu0 0.0
        %396 = vmatpush1.msra.mxu0 0.0
        %397 = vmatprep.subr.mxu0 0.0
        %398 = vmatpush1.msra.mxu0 0.0
        %399 = vmatprep.subr.mxu0 0.0
        %400 = vmatpush1.msra.mxu0 0.0
        %401 = vmatprep.subr.mxu0 0.0
        %402 = vmatpush1.msra.mxu0 0.0
        %403 = vmatprep.subr.mxu0 0.0
        %404 = vmatpush1.msra.mxu0 0.0
        %405 = vmatprep.subr.mxu0 0.0
        %406 = vmatpush1.msra.mxu0 0.0
        %407 = vmatprep.subr.mxu0 0.0
        %408 = vmatpush1.msra.mxu0 0.0
        %409 = vmatprep.subr.mxu0 0.0
        %410 = vmatpush1.msra.mxu0 0.0
        %411 = vmatprep.subr.mxu0 0.0
        %412 = vmatpush1.msra.mxu0 0.0
        %413 = vmatprep.subr.mxu0 0.0
        %414 = vmatpush1.msra.mxu0 0.0
        %415 = vmatprep.subr.mxu0 0.0
        %416 = vmatpush1.msra.mxu0 0.0
        %417 = vmatprep.subr.mxu0 0.0
        %418 = vmatpush1.msra.mxu0 0.0
        %419 = vmatprep.subr.mxu0 0.0
        %420 = vmatpush1.msra.mxu0 0.0
        %421 = vmatprep.subr.mxu0 0.0
        %422 = vmatpush1.msra.mxu0 0.0
        %423 = vmatprep.subr.mxu0 0.0
        %424 = vmatpush1.msra.mxu0 0.0
        %425 = vmatprep.subr.mxu0 0.0
        %426 = vmatpush1.msra.mxu0 0.0
        %427 = vmatprep.subr.mxu0 0.0
        %428 = vmatpush1.msra.mxu0 0.0
        %429 = vmatprep.subr.mxu0 0.0
        %430 = vmatpush1.msra.mxu0 0.0
        %431 = vmatprep.subr.mxu0 0.0
        %432 = vmatpush1.msra.mxu0 0.0
        %433 = vmatprep.subr.mxu0 0.0
        %434 = vmatpush1.msra.mxu0 0.0
        %435 = vmatprep.subr.mxu0 0.0
        %436 = vmatpush1.msra.mxu0 0.0
        %437 = vmatprep.subr.mxu0 0.0
        %438 = vmatpush1.msra.mxu0 0.0
        %439 = vmatprep.mubr.f32.mxu0 0.0
        %440 = vmatmul.mubr.f32.gmra.mrb[0].mxu0 %v373
        %v441 = vpop.f32.mrb[0].mxu0
        %v442 = vadd.f32 %v369, %v441
        %v443 = vpop.f32.mrb[0].mxu0
        %444 = vdwg.mxu0
        %vm445 = vcmask 31744
        %v446 = vsel %vm445, %v442, -inf
        %447 = vmax.xlane.f32.xlu0 %v446
        %v448 = vpop.xlane.xlu0 %447
        %v449 = vsub.f32 %v442, %v448
        %v450 = vmul.f32 %v449, 1.442695
        %v451 = vpow.pop %v450
        %v452 = vsel %vm445, %v451, 0.0
        %453 = vadd.xlane.f32.xlu0 %v452
        %v454 = vpop.xlane.xlu0 %453
        %v455 = vrcp.pop %v454
        %v456 = vmul.f32 %v451, %v455
        %457 = vst.msk [vmem:[#allocation3] sm:$0xff] %vm445, %v456
        %458 = vst.msk [vmem:[#allocation2] sm:$0xff] %vm371, 0.0
      $region52: #{transformer_lm_forward.5} parent=47 // pred_fallthru
        _
      %v459 = vpack.c.bf16 %v355, %v355
      %v460 = vld [vmem:[%s338] sm:$0xf]
      %v461 = vld [vmem:[%s338 + $0x4] sm:$0xf]
      %v462 = vld [vmem:[%s338 + $0x8] sm:$0xf]
      %v463 = vld [vmem:[%s338 + $0xc] sm:$0xf]
      %v464 = vld [vmem:[%s341] sm:$0x1]
      %v466 = vlaneseq
      %v467 = vshrl.u32 %v466, 7
      %v468 = vsub.s32 0, %v467
      %v469 = vrot.slane %v464, %v468
      %v475 = vunpack.c.l.b16 %v460
      %v476 = vunpack.c.l.b16 %v461
      %v477 = vunpack.c.l.b16 %v462
      %v478 = vunpack.c.l.b16 %v463
      %v479 = vpack.c.b16 %v476, %v475
      %v480 = vpack.c.b16 %v478, %v477
      %vm483 = vcmask 261120
      %v485 = vsel %vm483, %v459, 0
      %487 = vmatprep.subr.bf16.mxu0 0
      %488 = vmatpush1.bf16.msra.mxu0 %v479
      %489 = vmatprep.subr.bf16.mxu0 0
      %490 = vmatpush1.bf16.msra.mxu0 %v480
      %491 = vmatprep.subr.bf16.mxu0 0
      %492 = vmatpush1.bf16.msra.mxu0 0
      %493 = vmatprep.subr.bf16.mxu0 0
      %494 = vmatpush1.bf16.msra.mxu0 0
      %495 = vmatprep.subr.bf16.mxu0 0
      %496 = vmatpush1.bf16.msra.mxu0 0
      %497 = vmatprep.subr.bf16.mxu0 0
      %498 = vmatpush1.bf16.msra.mxu0 0
      %499 = vmatprep.subr.bf16.mxu0 0
      %500 = vmatpush1.bf16.msra.mxu0 0
      %501 = vmatprep.subr.bf16.mxu0 0
      %502 = vmatpush1.bf16.msra.mxu0 0
      %503 = vmatprep.subr.bf16.mxu0 0
      %504 = vmatpush1.bf16.msra.mxu0 0
      %505 = vmatprep.subr.bf16.mxu0 0
      %506 = vmatpush1.bf16.msra.mxu0 0
      %507 = vmatprep.subr.bf16.mxu0 0
      %508 = vmatpush1.bf16.msra.mxu0 0
      %509 = vmatprep.subr.bf16.mxu0 0
      %510 = vmatpush1.bf16.msra.mxu0 0
      %511 = vmatprep.subr.bf16.mxu0 0
      %512 = vmatpush1.bf16.msra.mxu0 0
      %513 = vmatprep.subr.bf16.mxu0 0
      %514 = vmatpush1.bf16.msra.mxu0 0
      %515 = vmatprep.subr.bf16.mxu0 0
      %516 = vmatpush1.bf16.msra.mxu0 0
      %517 = vmatprep.subr.bf16.mxu0 0
      %518 = vmatpush1.bf16.msra.mxu0 0
      %519 = vmatprep.mubr.bf16.mxu0 0
      %520 = vmatmul.mubr.bf16.gmra.mrb[0].mxu0 %v485
      %v521 = vpop.f32.mrb[0].mxu0
      %v522 = vadd.f32 %v469, %v521
      %v523 = vpop.f32.mrb[0].mxu0
      %v524 = vpop.f32.mrb[0].mxu0
      %v525 = vpop.f32.mrb[0].mxu0
      %526 = vdwg.mxu0
      %v527 = vlaneseq
      %v528 = vshrl.u32 %v527, 7
      %v529 = vpack.c.bf16 %v522, %v522
      %531 = vrot.lane.b32.xlu0 %v529, 96
      %v532 = vpop.permute.xlu0 %531
      %vm533 = vcmask 64512
      %v535 = vsel %vm533, %v529, 0
      %v538 = vsel %vm533, %v532, 0
      %540 = vmatprep.subr.bf16.mxu0 0
      %541 = vmatpush1.bf16.xpose.msra.mxu0 %v538
      %542 = vmatprep.subr.bf16.mxu0 0
      %543 = vmatpush1.bf16.xpose.msra.mxu0 0
      %544 = vmatprep.subr.bf16.mxu0 0
      %545 = vmatpush1.bf16.xpose.msra.mxu0 0
      %546 = vmatprep.subr.bf16.mxu0 0
      %547 = vmatpush1.bf16.xpose.msra.mxu0 0
      %548 = vmatprep.subr.bf16.mxu0 0
      %549 = vmatpush1.bf16.xpose.msra.mxu0 0
      %550 = vmatprep.subr.bf16.mxu0 0
      %551 = vmatpush1.bf16.xpose.msra.mxu0 0
      %552 = vmatprep.subr.bf16.mxu0 0
      %553 = vmatpush1.bf16.xpose.msra.mxu0 0
      %554 = vmatprep.subr.bf16.mxu0 0
      %555 = vmatpush1.bf16.xpose.msra.mxu0 0
      %556 = vmatprep.subr.bf16.mxu0 0
      %557 = vmatpush1.bf16.xpose.msra.mxu0 0
      %558 = vmatprep.subr.bf16.mxu0 0
      %559 = vmatpush1.bf16.xpose.msra.mxu0 0
      %560 = vmatprep.subr.bf16.mxu0 0
      %561 = vmatpush1.bf16.xpose.msra.mxu0 0
      %562 = vmatprep.subr.bf16.mxu0 0
      %563 = vmatpush1.bf16.xpose.msra.mxu0 0
      %564 = vmatprep.subr.bf16.mxu0 0
      %565 = vmatpush1.bf16.xpose.msra.mxu0 0
      %566 = vmatprep.subr.bf16.mxu0 0
      %567 = vmatpush1.bf16.xpose.msra.mxu0 0
      %568 = vmatprep.subr.bf16.mxu0 0
      %569 = vmatpush1.bf16.xpose.msra.mxu0 0
      %570 = vmatprep.subr.bf16.mxu0 0
      %571 = vmatpush1.bf16.xpose.msra.mxu0 0
      %572 = vmatprep.mubr.bf16.mxu0 0
      %573 = vmatmul.mubr.bf16.gmra.mrb[0].mxu0 %v535
      %v574 = vpop.f32.mrb[0].mxu0
      %v575 = vadd.f32 0.0, %v574
      %v576 = vpop.f32.mrb[0].mxu0
      %v577 = vpop.f32.mrb[0].mxu0
      %v578 = vpop.f32.mrb[0].mxu0
      %579 = vdwg.mxu0
      %v580 = vmul.f32 %v575, 0.35355338
      %v581 = vlaneseq
      %v582 = vand.u32 %v581, 127
      %vm583 = vcmp.le.s32.totalorder %v582, %v528
      %v584 = vsel %vm583, %v580, -1e+30
      %v585 = vsel %vm533, %v584, -inf
      %586 = vmax.xlane.f32.xlu0 %v585
      %v587 = vpop.xlane.xlu0 %586
      %v588 = vmax.f32 %v587, -1e+30
      %v589 = vsub.f32 -1e+30, %v588
      %v590 = vmul.f32 %v589, 1.442695
      %v591 = vpow.pop %v590
      %v592 = vsub.f32 %v584, %v588
      %v593 = vmul.f32 %v592, 1.442695
      %v594 = vpow.pop %v593
      %v595 = vmul.f32 %v591, 0.0
      %v596 = vsel %vm533, %v594, 0.0
      %597 = vadd.xlane.f32.xlu0 %v596
      %v598 = vpop.xlane.xlu0 %597
      %v599 = vadd.f32 %v595, %v598
      %v600 = vpack.c.bf16 %v594, %v594
      %601 = vrot.lane.b32.xlu0 %v529, 64
      %v602 = vpop.permute.xlu0 %601
      %v604 = vsel %vm533, %v600, 0
      %vm606 = vcmask 1043456
      %v608 = vsel %vm606, %v602, 0
      %610 = vmatprep.subr.bf16.mxu0 0
      %611 = vmatpush1.bf16.msra.mxu0 %v608
      %612 = vmatprep.subr.bf16.mxu0 0
      %613 = vmatpush1.bf16.msra.mxu0 0
      %614 = vmatprep.subr.bf16.mxu0 0
      %615 = vmatpush1.bf16.msra.mxu0 0
      %616 = vmatprep.subr.bf16.mxu0 0
      %617 = vmatpush1.bf16.msra.mxu0 0
      %618 = vmatprep.subr.bf16.mxu0 0
      %619 = vmatpush1.bf16.msra.mxu0 0
      %620 = vmatprep.subr.bf16.mxu0 0
      %621 = vmatpush1.bf16.msra.mxu0 0
      %622 = vmatprep.subr.bf16.mxu0 0
      %623 = vmatpush1.bf16.msra.mxu0 0
      %624 = vmatprep.subr.bf16.mxu0 0
      %625 = vmatpush1.bf16.msra.mxu0 0
      %626 = vmatprep.subr.bf16.mxu0 0
      %627 = vmatpush1.bf16.msra.mxu0 0
      %628 = vmatprep.subr.bf16.mxu0 0
      %629 = vmatpush1.bf16.msra.mxu0 0
      %630 = vmatprep.subr.bf16.mxu0 0
      %631 = vmatpush1.bf16.msra.mxu0 0
      %632 = vmatprep.subr.bf16.mxu0 0
      %633 = vmatpush1.bf16.msra.mxu0 0
      %634 = vmatprep.subr.bf16.mxu0 0
      %635 = vmatpush1.bf16.msra.mxu0 0
      %636 = vmatprep.subr.bf16.mxu0 0
      %637 = vmatpush1.bf16.msra.mxu0 0
      %638 = vmatprep.subr.bf16.mxu0 0
      %639 = vmatpush1.bf16.msra.mxu0 0
      %640 = vmatprep.subr.bf16.mxu0 0
      %641 = vmatpush1.bf16.msra.mxu0 0
      %642 = vmatprep.mubr.bf16.mxu0 0
      %643 = vmatmul.mubr.bf16.gmra.mrb[0].mxu0 %v604
      %v644 = vpop.f32.mrb[0].mxu0
      %v645 = vadd.f32 0.0, %v644
      %v646 = vpop.f32.mrb[0].mxu0
      %v647 = vpop.f32.mrb[0].mxu0
      %v648 = vpop.f32.mrb[0].mxu0
      %649 = vdwg.mxu0
      %v650 = vadd.f32 %v595, %v645
      %v651 = vrcp.pop %v599
      %v652 = vmul.f32 %v650, %v651
      %653 = vrot.lane.b32.xlu0 %v529, 120
      %v654 = vpop.permute.xlu0 %653
      %655 = vrot.lane.b32.xlu0 %v529, 88
      %v656 = vpop.permute.xlu0 %655
      %v658 = vsel %vm533, %v654, 0
      %v661 = vsel %vm533, %v656, 0
      %663 = vmatprep.subr.bf16.mxu0 0
      %664 = vmatpush1.bf16.xpose.msra.mxu0 %v661
      %665 = vmatprep.subr.bf16.mxu0 0
      %666 = vmatpush1.bf16.xpose.msra.mxu0 0
      %667 = vmatprep.subr.bf16.mxu0 0
      %668 = vmatpush1.bf16.xpose.msra.mxu0 0
      %669 = vmatprep.subr.bf16.mxu0 0
      %670 = vmatpush1.bf16.xpose.msra.mxu0 0
      %671 = vmatprep.subr.bf16.mxu0 0
      %672 = vmatpush1.bf16.xpose.msra.mxu0 0
      %673 = vmatprep.subr.bf16.mxu0 0
      %674 = vmatpush1.bf16.xpose.msra.mxu0 0
      %675 = vmatprep.subr.bf16.mxu0 0
      %676 = vmatpush1.bf16.xpose.msra.mxu0 0
      %677 = vmatprep.subr.bf16.mxu0 0
      %678 = vmatpush1.bf16.xpose.msra.mxu0 0
      %679 = vmatprep.subr.bf16.mxu0 0
      %680 = vmatpush1.bf16.xpose.msra.mxu0 0
      %681 = vmatprep.subr.bf16.mxu0 0
      %682 = vmatpush1.bf16.xpose.msra.mxu0 0
      %683 = vmatprep.subr.bf16.mxu0 0
      %684 = vmatpush1.bf16.xpose.msra.mxu0 0
      %685 = vmatprep.subr.bf16.mxu0 0
      %686 = vmatpush1.bf16.xpose.msra.mxu0 0
      %687 = vmatprep.subr.bf16.mxu0 0
      %688 = vmatpush1.bf16.xpose.msra.mxu0 0
      %689 = vmatprep.subr.bf16.mxu0 0
      %690 = vmatpush1.bf16.xpose.msra.mxu0 0
      %691 = vmatprep.subr.bf16.mxu0 0
      %692 = vmatpush1.bf16.xpose.msra.mxu0 0
      %693 = vmatprep.subr.bf16.mxu0 0
      %694 = vmatpush1.bf16.xpose.msra.mxu0 0
      %695 = vmatprep.mubr.bf16.mxu0 0
      %696 = vmatmul.mubr.bf16.gmra.mrb[0].mxu0 %v658
      %v697 = vpop.f32.mrb[0].mxu0
      %v698 = vadd.f32 0.0, %v697
      %v699 = vpop.f32.mrb[0].mxu0
      %v700 = vpop.f32.mrb[0].mxu0
      %v701 = vpop.f32.mrb[0].mxu0
      %702 = vdwg.mxu0
      %v703 = vmul.f32 %v698, 0.35355338
      %v704 = vsel %vm583, %v703, -1e+30
      %v705 = vsel %vm533, %v704, -inf
      %706 = vmax.xlane.f32.xlu0 %v705
      %v707 = vpop.xlane.xlu0 %706
      %v708 = vmax.f32 %v707, -1e+30
      %v709 = vsub.f32 -1e+30, %v708
      %v710 = vmul.f32 %v709, 1.442695
      %v711 = vpow.pop %v710
      %v712 = vsub.f32 %v704, %v708
      %v713 = vmul.f32 %v712, 1.442695
      %v714 = vpow.pop %v713
      %v715 = vmul.f32 %v711, 0.0
      %v716 = vsel %vm533, %v714, 0.0
      %717 = vadd.xlane.f32.xlu0 %v716
      %v718 = vpop.xlane.xlu0 %717
      %v719 = vadd.f32 %v715, %v718
      %v720 = vpack.c.bf16 %v714, %v714
      %721 = vrot.lane.b32.xlu0 %v529, 56
      %v722 = vpop.permute.xlu0 %721
      %v724 = vsel %vm533, %v720, 0
      %v727 = vsel %vm606, %v722, 0
      %729 = vmatprep.subr.bf16.mxu0 0
      %730 = vmatpush1.bf16.msra.mxu0 %v727
      %731 = vmatprep.subr.bf16.mxu0 0
      %732 = vmatpush1.bf16.msra.mxu0 0
      %733 = vmatprep.subr.bf16.mxu0 0
      %734 = vmatpush1.bf16.msra.mxu0 0
      %735 = vmatprep.subr.bf16.mxu0 0
      %736 = vmatpush1.bf16.msra.mxu0 0
      %737 = vmatprep.subr.bf16.mxu0 0
      %738 = vmatpush1.bf16.msra.mxu0 0
      %739 = vmatprep.subr.bf16.mxu0 0
      %740 = vmatpush1.bf16.msra.mxu0 0
      %741 = vmatprep.subr.bf16.mxu0 0
      %742 = vmatpush1.bf16.msra.mxu0 0
      %743 = vmatprep.subr.bf16.mxu0 0
      %744 = vmatpush1.bf16.msra.mxu0 0
      %745 = vmatprep.subr.bf16.mxu0 0
      %746 = vmatpush1.bf16.msra.mxu0 0
      %747 = vmatprep.subr.bf16.mxu0 0
      %748 = vmatpush1.bf16.msra.mxu0 0
      %749 = vmatprep.subr.bf16.mxu0 0
      %750 = vmatpush1.bf16.msra.mxu0 0
      %751 = vmatprep.subr.bf16.mxu0 0
      %752 = vmatpush1.bf16.msra.mxu0 0
      %753 = vmatprep.subr.bf16.mxu0 0
      %754 = vmatpush1.bf16.msra.mxu0 0
      %755 = vmatprep.subr.bf16.mxu0 0
      %756 = vmatpush1.bf16.msra.mxu0 0
      %757 = vmatprep.subr.bf16.mxu0 0
      %758 = vmatpush1.bf16.msra.mxu0 0
      %759 = vmatprep.subr.bf16.mxu0 0
      %760 = vmatpush1.bf16.msra.mxu0 0
      %761 = vmatprep.mubr.bf16.mxu0 0
      %762 = vmatmul.mubr.bf16.gmra.mrb[0].mxu0 %v724
      %v763 = vpop.f32.mrb[0].mxu0
      %v764 = vadd.f32 0.0, %v763
      %v765 = vpop.f32.mrb[0].mxu0
      %v766 = vpop.f32.mrb[0].mxu0
      %v767 = vpop.f32.mrb[0].mxu0
      %768 = vdwg.mxu0
      %v769 = vadd.f32 %v715, %v764
      %v770 = vrcp.pop %v719
      %v771 = vmul.f32 %v769, %v770
      %772 = vrot.lane.b32.xlu0 %v529, 112
      %v773 = vpop.permute.xlu0 %772
      %774 = vrot.lane.b32.xlu0 %v529, 80
      %v775 = vpop.permute.xlu0 %774
      %v777 = vsel %vm533, %v773, 0
      %v780 = vsel %vm533, %v775, 0
      %782 = vmatprep.subr.bf16.mxu0 0
      %783 = vmatpush1.bf16.xpose.msra.mxu0 %v780
      %784 = vmatprep.subr.bf16.mxu0 0
      %785 = vmatpush1.bf16.xpose.msra.mxu0 0
      %786 = vmatprep.subr.bf16.mxu0 0
      %787 = vmatpush1.bf16.xpose.msra.mxu0 0
      %788 = vmatprep.subr.bf16.mxu0 0
      %789 = vmatpush1.bf16.xpose.msra.mxu0 0
      %790 = vmatprep.subr.bf16.mxu0 0
      %791 = vmatpush1.bf16.xpose.msra.mxu0 0
      %792 = vmatprep.subr.bf16.mxu0 0
      %793 = vmatpush1.bf16.xpose.msra.mxu0 0
      %794 = vmatprep.subr.bf16.mxu0 0
      %795 = vmatpush1.bf16.xpose.msra.mxu0 0
      %796 = vmatprep.subr.bf16.mxu0 0
      %797 = vmatpush1.bf16.xpose.msra.mxu0 0
      %798 = vmatprep.subr.bf16.mxu0 0
      %799 = vmatpush1.bf16.xpose.msra.mxu0 0
      %800 = vmatprep.subr.bf16.mxu0 0
      %801 = vmatpush1.bf16.xpose.msra.mxu0 0
      %802 = vmatprep.subr.bf16.mxu0 0
      %803 = vmatpush1.bf16.xpose.msra.mxu0 0
      %804 = vmatprep.subr.bf16.mxu0 0
      %805 = vmatpush1.bf16.xpose.msra.mxu0 0
      %806 = vmatprep.subr.bf16.mxu0 0
      %807 = vmatpush1.bf16.xpose.msra.mxu0 0
      %808 = vmatprep.subr.bf16.mxu0 0
      %809 = vmatpush1.bf16.xpose.msra.mxu0 0
      %810 = vmatprep.subr.bf16.mxu0 0
      %811 = vmatpush1.bf16.xpose.msra.mxu0 0
      %812 = vmatprep.subr.bf16.mxu0 0
      %813 = vmatpush1.bf16.xpose.msra.mxu0 0
      %814 = vmatprep.mubr.bf16.mxu0 0
      %815 = vmatmul.mubr.bf16.gmra.mrb[0].mxu0 %v777
      %v816 = vpop.f32.mrb[0].mxu0
      %v817 = vadd.f32 0.0, %v816
      %v818 = vpop.f32.mrb[0].mxu0
      %v819 = vpop.f32.mrb[0].mxu0
      %v820 = vpop.f32.mrb[0].mxu0
      %821 = vdwg.mxu0
      %v822 = vmul.f32 %v817, 0.35355338
      %v823 = vsel %vm583, %v822, -1e+30
      %v824 = vsel %vm533, %v823, -inf
      %825 = vmax.xlane.f32.xlu0 %v824
      %v826 = vpop.xlane.xlu0 %825
      %v827 = vmax.f32 %v826, -1e+30
      %v828 = vsub.f32 -1e+30, %v827
      %v829 = vmul.f32 %v828, 1.442695
      %v830 = vpow.pop %v829
      %v831 = vsub.f32 %v823, %v827
      %v832 = vmul.f32 %v831, 1.442695
      %v833 = vpow.pop %v832
      %v834 = vmul.f32 %v830, 0.0
      %v835 = vsel %vm533, %v833, 0.0
      %836 = vadd.xlane.f32.xlu0 %v835
      %v837 = vpop.xlane.xlu0 %836
      %v838 = vadd.f32 %v834, %v837
      %v839 = vpack.c.bf16 %v833, %v833
      %840 = vrot.lane.b32.xlu0 %v529, 48
      %v841 = vpop.permute.xlu0 %840
      %v843 = vsel %vm533, %v839, 0
      %v846 = vsel %vm606, %v841, 0
      %848 = vmatprep.subr.bf16.mxu0 0
      %849 = vmatpush1.bf16.msra.mxu0 %v846
      %850 = vmatprep.subr.bf16.mxu0 0
      %851 = vmatpush1.bf16.msra.mxu0 0
      %852 = vmatprep.subr.bf16.mxu0 0
      %853 = vmatpush1.bf16.msra.mxu0 0
      %854 = vmatprep.subr.bf16.mxu0 0
      %855 = vmatpush1.bf16.msra.mxu0 0
      %856 = vmatprep.subr.bf16.mxu0 0
      %857 = vmatpush1.bf16.msra.mxu0 0
      %858 = vmatprep.subr.bf16.mxu0 0
      %859 = vmatpush1.bf16.msra.mxu0 0
      %860 = vmatprep.subr.bf16.mxu0 0
      %861 = vmatpush1.bf16.msra.mxu0 0
      %862 = vmatprep.subr.bf16.mxu0 0
      %863 = vmatpush1.bf16.msra.mxu0 0
      %864 = vmatprep.subr.bf16.mxu0 0
      %865 = vmatpush1.bf16.msra.mxu0 0
      %866 = vmatprep.subr.bf16.mxu0 0
      %867 = vmatpush1.bf16.msra.mxu0 0
      %868 = vmatprep.subr.bf16.mxu0 0
      %869 = vmatpush1.bf16.msra.mxu0 0
      %870 = vmatprep.subr.bf16.mxu0 0
      %871 = vmatpush1.bf16.msra.mxu0 0
      %872 = vmatprep.subr.bf16.mxu0 0
      %873 = vmatpush1.bf16.msra.mxu0 0
      %874 = vmatprep.subr.bf16.mxu0 0
      %875 = vmatpush1.bf16.msra.mxu0 0
      %876 = vmatprep.subr.bf16.mxu0 0
      %877 = vmatpush1.bf16.msra.mxu0 0
      %878 = vmatprep.subr.bf16.mxu0 0
      %879 = vmatpush1.bf16.msra.mxu0 0
      %880 = vmatprep.mubr.bf16.mxu0 0
      %881 = vmatmul.mubr.bf16.gmra.mrb[0].mxu0 %v843
      %v882 = vpop.f32.mrb[0].mxu0
      %v883 = vadd.f32 0.0, %v882
      %v884 = vpop.f32.mrb[0].mxu0
      %v885 = vpop.f32.mrb[0].mxu0
      %v886 = vpop.f32.mrb[0].mxu0
      %887 = vdwg.mxu0
      %v888 = vadd.f32 %v834, %v883
      %v889 = vrcp.pop %v838
      %v890 = vmul.f32 %v888, %v889
      %891 = vrot.lane.b32.xlu0 %v529, 104
      %v892 = vpop.permute.xlu0 %891
      %893 = vrot.lane.b32.xlu0 %v529, 72
      %v894 = vpop.permute.xlu0 %893
      %v896 = vsel %vm533, %v892, 0
      %v899 = vsel %vm533, %v894, 0
      %901 = vmatprep.subr.bf16.mxu0 0
      %902 = vmatpush1.bf16.xpose.msra.mxu0 %v899
      %903 = vmatprep.subr.bf16.mxu0 0
      %904 = vmatpush1.bf16.xpose.msra.mxu0 0
      %905 = vmatprep.subr.bf16.mxu0 0
      %906 = vmatpush1.bf16.xpose.msra.mxu0 0
      %907 = vmatprep.subr.bf16.mxu0 0
      %908 = vmatpush1.bf16.xpose.msra.mxu0 0
      %909 = vmatprep.subr.bf16.mxu0 0
      %910 = vmatpush1.bf16.xpose.msra.mxu0 0
      %911 = vmatprep.subr.bf16.mxu0 0
      %912 = vmatpush1.bf16.xpose.msra.mxu0 0
      %913 = vmatprep.subr.bf16.mxu0 0
      %914 = vmatpush1.bf16.xpose.msra.mxu0 0
      %915 = vmatprep.subr.bf16.mxu0 0
      %916 = vmatpush1.bf16.xpose.msra.mxu0 0
      %917 = vmatprep.subr.bf16.mxu0 0
      %918 = vmatpush1.bf16.xpose.msra.mxu0 0
      %919 = vmatprep.subr.bf16.mxu0 0
      %920 = vmatpush1.bf16.xpose.msra.mxu0 0
      %921 = vmatprep.subr.bf16.mxu0 0
      %922 = vmatpush1.bf16.xpose.msra.mxu0 0
      %923 = vmatprep.subr.bf16.mxu0 0
      %924 = vmatpush1.bf16.xpose.msra.mxu0 0
      %925 = vmatprep.subr.bf16.mxu0 0
      %926 = vmatpush1.bf16.xpose.msra.mxu0 0
      %927 = vmatprep.subr.bf16.mxu0 0
      %928 = vmatpush1.bf16.xpose.msra.mxu0 0
      %929 = vmatprep.subr.bf16.mxu0 0
      %930 = vmatpush1.bf16.xpose.msra.mxu0 0
      %931 = vmatprep.subr.bf16.mxu0 0
      %932 = vmatpush1.bf16.xpose.msra.mxu0 0
      %933 = vmatprep.mubr.bf16.mxu0 0
      %934 = vmatmul.mubr.bf16.gmra.mrb[0].mxu0 %v896
      %v935 = vpop.f32.mrb[0].mxu0
      %v936 = vadd.f32 0.0, %v935
      %v937 = vpop.f32.mrb[0].mxu0
      %v938 = vpop.f32.mrb[0].mxu0
      %v939 = vpop.f32.mrb[0].mxu0
      %940 = vdwg.mxu0
      %v941 = vmul.f32 %v936, 0.35355338
      %v942 = vsel %vm583, %v941, -1e+30
      %v943 = vsel %vm533, %v942, -inf
      %944 = vmax.xlane.f32.xlu0 %v943
      %v945 = vpop.xlane.xlu0 %944
      %v946 = vmax.f32 %v945, -1e+30
      %v947 = vsub.f32 -1e+30, %v946
      %v948 = vmul.f32 %v947, 1.442695
      %v949 = vpow.pop %v948
      %v950 = vsub.f32 %v942, %v946
      %v951 = vmul.f32 %v950, 1.442695
      %v952 = vpow.pop %v951
      %v953 = vmul.f32 %v949, 0.0
      %v954 = vsel %vm533, %v952, 0.0
      %955 = vadd.xlane.f32.xlu0 %v954
      %v956 = vpop.xlane.xlu0 %955
      %v957 = vadd.f32 %v953, %v956
      %v958 = vpack.c.bf16 %v952, %v952
      %959 = vrot.lane.b32.xlu0 %v529, 40
      %v960 = vpop.permute.xlu0 %959
      %v962 = vsel %vm533, %v958, 0
      %v965 = vsel %vm606, %v960, 0
      %967 = vmatprep.subr.bf16.mxu0 0
      %968 = vmatpush1.bf16.msra.mxu0 %v965
      %969 = vmatprep.subr.bf16.mxu0 0
      %970 = vmatpush1.bf16.msra.mxu0 0
      %971 = vmatprep.subr.bf16.mxu0 0
      %972 = vmatpush1.bf16.msra.mxu0 0
      %973 = vmatprep.subr.bf16.mxu0 0
      %974 = vmatpush1.bf16.msra.mxu0 0
      %975 = vmatprep.subr.bf16.mxu0 0
      %976 = vmatpush1.bf16.msra.mxu0 0
      %977 = vmatprep.subr.bf16.mxu0 0
      %978 = vmatpush1.bf16.msra.mxu0 0
      %979 = vmatprep.subr.bf16.mxu0 0
      %980 = vmatpush1.bf16.msra.mxu0 0
      %981 = vmatprep.subr.bf16.mxu0 0
      %982 = vmatpush1.bf16.msra.mxu0 0
      %983 = vmatprep.subr.bf16.mxu0 0
      %984 = vmatpush1.bf16.msra.mxu0 0
      %985 = vmatprep.subr.bf16.mxu0 0
      %986 = vmatpush1.bf16.msra.mxu0 0
      %987 = vmatprep.subr.bf16.mxu0 0
      %988 = vmatpush1.bf16.msra.mxu0 0
      %989 = vmatprep.subr.bf16.mxu0 0
      %990 = vmatpush1.bf16.msra.mxu0 0
      %991 = vmatprep.subr.bf16.mxu0 0
      %992 = vmatpush1.bf16.msra.mxu0 0
      %993 = vmatprep.subr.bf16.mxu0 0
      %994 = vmatpush1.bf16.msra.mxu0 0
      %995 = vmatprep.subr.bf16.mxu0 0
      %996 = vmatpush1.bf16.msra.mxu0 0
      %997 = vmatprep.subr.bf16.mxu0 0
      %998 = vmatpush1.bf16.msra.mxu0 0
      %999 = vmatprep.mubr.bf16.mxu0 0
      %1000 = vmatmul.mubr.bf16.gmra.mrb[0].mxu0 %v962
      %v1001 = vpop.f32.mrb[0].mxu0
      %v1002 = vadd.f32 0.0, %v1001
      %v1003 = vpop.f32.mrb[0].mxu0
      %v1004 = vpop.f32.mrb[0].mxu0
      %v1005 = vpop.f32.mrb[0].mxu0
      %1006 = vdwg.mxu0
      %v1007 = vadd.f32 %v953, %v1002
      %v1008 = vrcp.pop %v957
      %v1009 = vmul.f32 %v1007, %v1008
      %1011 = vrot.lane.b32.xlu0 %v771, 8
      %v1012 = vpop.permute.xlu0 %1011
      %1015 = vrot.lane.b32.xlu0 %v890, 16
      %v1016 = vpop.permute.xlu0 %1015
      %1019 = vrot.lane.b32.xlu0 %v1009, 24
      %v1020 = vpop.permute.xlu0 %1019
      %v1022 = vsel %vm533, %v652, %v1012
      %vm1023 = vcmask 130048
      %v1024 = vsel %vm1023, %v1022, %v1016
      %vm1025 = vcmask 195584
      %v1026 = vsel %vm1025, %v1024, %v1020
      %v1027 = vpack.c.bf16 %v1026, %v1026
      %v1028 = vld [vmem:[%s346] sm:$0xf]
      %v1029 = vld [vmem:[%s346 + $0x4] sm:$0xf]
      %v1030 = vld [vmem:[%s346 + $0x8] sm:$0xf]
      %v1031 = vld [vmem:[%s346 + $0xc] sm:$0xf]
      %v1032 = vld [vmem:[%s349] sm:$0x1]
      %v1034 = vlaneseq
      %v1035 = vshrl.u32 %v1034, 7
      %v1036 = vsub.s32 0, %v1035
      %v1037 = vrot.slane %v1032, %v1036
      %v1043 = vunpack.c.l.b16 %v1028
      %v1044 = vunpack.c.l.b16 %v1029
      %v1045 = vunpack.c.l.b16 %v1030
      %v1046 = vunpack.c.l.b16 %v1031
      %v1047 = vpack.c.b16 %v1044, %v1043
      %v1048 = vpack.c.b16 %v1046, %v1045
      %v1052 = vsel %vm483, %v1027, 0
      %1054 = vmatprep.subr.bf16.mxu0 0
      %1055 = vmatpush1.bf16.msra.mxu0 %v1047
      %1056 = vmatprep.subr.bf16.mxu0 0
      %1057 = vmatpush1.bf16.msra.mxu0 %v1048
      %1058 = vmatprep.subr.bf16.mxu0 0
      %1059 = vmatpush1.bf16.msra.mxu0 0
      %1060 = vmatprep.subr.bf16.mxu0 0
      %1061 = vmatpush1.bf16.msra.mxu0 0
      %1062 = vmatprep.subr.bf16.mxu0 0
      %1063 = vmatpush1.bf16.msra.mxu0 0
      %1064 = vmatprep.subr.bf16.mxu0 0
      %1065 = vmatpush1.bf16.msra.mxu0 0
      %1066 = vmatprep.subr.bf16.mxu0 0
      %1067 = vmatpush1.bf16.msra.mxu0 0
      %1068 = vmatprep.subr.bf16.mxu0 0
      %1069 = vmatpush1.bf16.msra.mxu0 0
      %1070 = vmatprep.subr.bf16.mxu0 0
      %1071 = vmatpush1.bf16.msra.mxu0 0
      %1072 = vmatprep.subr.bf16.mxu0 0
      %1073 = vmatpush1.bf16.msra.mxu0 0
      %1074 = vmatprep.subr.bf16.mxu0 0
      %1075 = vmatpush1.bf16.msra.mxu0 0
      %1076 = vmatprep.subr.bf16.mxu0 0
      %1077 = vmatpush1.bf16.msra.mxu0 0
      %1078 = vmatprep.subr.bf16.mxu0 0
      %1079 = vmatpush1.bf16.msra.mxu0 0
      %1080 = vmatprep.subr.bf16.mxu0 0
      %1081 = vmatpush1.bf16.msra.mxu0 0
      %1082 = vmatprep.subr.bf16.mxu0 0
      %1083 = vmatpush1.bf16.msra.mxu0 0
      %1084 = vmatprep.subr.bf16.mxu0 0
      %1085 = vmatpush1.bf16.msra.mxu0 0
      %1086 = vmatprep.mubr.bf16.mxu0 0
      %1087 = vmatmul.mubr.bf16.gmra.mrb[0].mxu0 %v1052
      %v1088 = vpop.f32.mrb[0].mxu0
      %v1089 = vadd.f32 %v1037, %v1088
      %v1090 = vpop.f32.mrb[0].mxu0
      %v1091 = vpop.f32.mrb[0].mxu0
      %v1092 = vpop.f32.mrb[0].mxu0
      %1093 = vdwg.mxu0
      %v1094 = vld [vmem:[#allocation3] sm:$0xff]
      %v1095 = vstv %s23
      %vm1096 = vcmp.eq.s32.totalorder %v582, %v1095
      %v1097 = vsel %vm1096, %v1094, 0.0
      %vm1098 = vcmask 31744
      %v1099 = vsel %vm1098, %v1097, 0.0
      %1100 = vadd.xlane.f32.xlu0 %v1099
      %v1101 = vpop.xlane.xlu0 %1100
      %v1102 = vld [vmem:[#allocation2] sm:$0xff]
      %v1103 = vmul.f32 %v1101, %v1089
      %v1104 = vadd.f32 %v1102, %v1103
      %1105 = vst.msk [vmem:[#allocation2] sm:$0xff] %vm483, %v1104
      %p1106 = scmp.eq.s32.totalorder %s23, 3
      // Predicated region
      $region53: #{transformer_lm_forward.5} parent=47 // pred_check
        %p1107 = pneg %p1106
      $region54: #{transformer_lm_forward.5} parent=47 // pred_check_branch
        %1109 = sbr.rel (%p1107) target = $region56
      $region55: #{transformer_lm_forward.5} parent=47 // pred_region
        %v1110 = vld [vmem:[#allocation2] sm:$0xff]
        %1111 = vst.msk [vmem:[%s353] sm:$0xff] %vm483, %v1110
      $region56: #{transformer_lm_forward.5} parent=47 // pred_fallthru
        _
      %p1112 = scmp.lt.s32.totalorder %s22, 1
      %s1113 = scalar_select %p1112, %s22, 1
      %s1114 = smul.addr %s1113, 8
      %s1115 = scalar_lea.vmem %s7, %s1114
      // Predicated region
      $region57: #{transformer_lm_forward.5} parent=47 // pred_check
        %p1116 = pneg %p220
      $region58: #{transformer_lm_forward.5} parent=47 // pred_check_branch
        %1118 = sbr.rel (%p1116) target = $region60
      $region59: #{transformer_lm_forward.5} parent=47 // pred_region
        _
      $region60: #{transformer_lm_forward.5} parent=47 // pred_fallthru
        _
    $region48: #{transformer_lm_forward.5} parent=5 // pred_fallthru
      _
    %p1119 = scmp.le.s32.totalorder 2, %s13
    // Predicated region
    $region61: #{transformer_lm_forward.5} parent=5 // pred_check
      %p1120 = pneg %p1119
    $region62: #{transformer_lm_forward.5} parent=5 // pred_check_branch
      %1122 = sbr.rel (%p1120) target = $region64
    $region63: #{transformer_lm_forward.5} parent=5 // pred_region
      %s1123 = ssub.s32 %s13, 2
      // Predicated region
      $region65: #{transformer_lm_forward.5} parent=63 // pred_check
        %p1124 = pneg %p226
      $region66: #{transformer_lm_forward.5} parent=63 // pred_check_branch
        %1126 = sbr.rel (%p1124) target = $region68
      $region67: #{transformer_lm_forward.5} parent=63 // pred_region
        %p1127 = scmp.lt.s32.totalorder %s24, 1
        %s1128 = scalar_select %p1127, %s24, 1
        %s1129 = smul.addr %s1128, 8
        %s1130 = scalar_lea.vmem %s7, %s1129
      $region68: #{transformer_lm_forward.5} parent=63 // pred_fallthru
        _
    $region64: #{transformer_lm_forward.5} parent=5 // pred_fallthru
      _
  $region6: #{transformer_lm_forward.5} parent=0 // loop_footer
    %s17 = sadd.s32 1, %s13
  $region7: #{transformer_lm_forward.5} parent=0 // loop_footer_branch
    %12 = sbr.rel target = $region3
  $region8: #{transformer_lm_forward.5} parent=0 // loop_exit
    _

</llo_original>
